<compile_context>
chip_gen: v5e
topology: v5e:2x2
jax: 0.10.0
libtpu: 0.0.40
codegen_flags: <defaults>
</compile_context>

<pallas_src>
import jax
import jax.numpy as jnp
import numpy as np
from jax import lax
from jax.experimental import pallas as pl
from jax.experimental.pallas import tpu as pltpu


def _round_up(x, m):
    return (x + m - 1) // m * m


# ------------------------------ fused kernel --------------------------------- #

def _make_fused_kernel(Wp, guard, out_p, slab):
    """All offsets/shapes are static Python ints baked into the trace."""
    # 3x3 tap shifts in flattened frame coordinates (dy-major, then dx) --
    # matches the (Cout, dy, dx, cin) weight flattening done in the wrapper.
    shifts = [(dy - 1) * Wp + (dx - 1) for dy in range(3) for dx in range(3)]
    pad_r = slab - guard - out_p

    def taps(frame):
        # im2col: 9 statically lane-shifted views stacked on the sublane axis.
        return jnp.concatenate(
            [frame[:, guard + s: guard + s + out_p] for s in shifts], axis=0)

    def embed(x_bf16):
        # Re-embed a (C, out_p) bf16 result into a zero-guarded frame; guard
        # pieces are 128-lane multiples, so the lane concat is tile aligned.
        c = x_bf16.shape[0]
        return jnp.concatenate(
            [jnp.zeros((c, guard), jnp.bfloat16), x_bf16,
             jnp.zeros((c, pad_r), jnp.bfloat16)], axis=1)

    def kernel(x1_ref, x2_ref, mask_ref, w1_ref, b1_ref,
               w2a_ref, w2b_ref, b2_ref, w3_ref, b3_ref, o_ref):
        mask = mask_ref[...]                    # (1, out_p) f32; 0 on halo/tail
        f1 = x1_ref[...]                        # (C1p, slab) bf16, pre-framed
        f2 = x2_ref[...]                        # (C2p, slab) bf16, pre-dilated

        # conv1: ConvTranspose2d(3, s=2, p=1, op=1) + BN + ReLU, expressed as a
        # same-conv (flipped kernel) over the pre-dilated frame.  One MXU matmul.
        acc1 = jnp.dot(w1_ref[...], taps(f2), preferred_element_type=jnp.float32)
        up = jnp.maximum(acc1 + b1_ref[...], 0.0) * mask           # halo := 0
        f_up = embed(up.astype(jnp.bfloat16))

        # conv2 + BN + ReLU.  torch.cat([x1, up], dim=1) is never built: the
        # weight is split into two K-blocks and the two matmuls accumulate.
        acc2 = jnp.dot(w2a_ref[...], taps(f1), preferred_element_type=jnp.float32)
        acc2 = acc2 + jnp.dot(w2b_ref[...], taps(f_up),
                              preferred_element_type=jnp.float32)
        mid = jnp.maximum(acc2 + b2_ref[...], 0.0) * mask
        f_mid = embed(mid.astype(jnp.bfloat16))

        # conv3 + BN + ReLU.  Halo / lane-tail positions hold junk (cropped by
        # the wrapper); the store itself is a dense 768-lane f32 store.
        acc3 = jnp.dot(w3_ref[...], taps(f_mid), preferred_element_type=jnp.float32)
        o_ref[...] = jnp.maximum(acc3 + b3_ref[...], 0.0)

    return kernel


# --------------------------- BN folding / weights ---------------------------- #

def _fold_bn(p, eps=1e-5):
    scale = p["gamma"] * lax.rsqrt(p["var"] + eps)
    bias = p["beta"] - p["mean"] * scale
    return scale, bias


def init_aggregate_block_params(key, in_ch1, in_ch2, out_ch):
    cat_ch = in_ch1 + in_ch2
    ks = jax.random.split(key, 9)

    def bn(kg, kb, c):
        return dict(
            gamma=jax.random.uniform(kg, (c,), jnp.float32, 0.5, 1.5),
            beta=0.1 * jax.random.normal(kb, (c,), jnp.float32),
            mean=jnp.zeros((c,), jnp.float32),
            var=jnp.ones((c,), jnp.float32),
        )

    params = {
        # ConvTranspose2d weight layout: (in_ch, out_ch, kH, kW)
        "conv1": dict(w=0.2 * jax.random.normal(ks[0], (in_ch2, in_ch2, 3, 3), jnp.float32),
                      **bn(ks[1], ks[2], in_ch2)),
        # Conv2d weight layout: (out_ch, in_ch, kH, kW)
        "conv2": dict(w=0.2 * jax.random.normal(ks[3], (cat_ch, cat_ch, 3, 3), jnp.float32),
                      **bn(ks[4], ks[5], cat_ch)),
        "conv3": dict(w=0.2 * jax.random.normal(ks[6], (out_ch, cat_ch, 3, 3), jnp.float32),
                      **bn(ks[7], ks[8], out_ch)),
    }
    return params


# ------------------------------ fused forward -------------------------------- #

def aggregate_block_forward_pallas(params, x1_nchw, x2_nchw):
    """Mirrors AggregateBlock.forward. Inputs/outputs are NCHW like PyTorch."""
    N, C1, H, W = x1_nchw.shape
    N2, C2, H2, W2 = x2_nchw.shape
    assert N == N2 and H == 2 * H2 and W == 2 * W2
    Hp, Wp = H + 2, W + 2
    P = Hp * Wp
    NP = N * P

    CP = 16                                       # bf16 sublane-packing alignment
    C1p, C2p = _round_up(C1, CP), _round_up(C2, CP)
    C12 = C1 + C2
    C12p = _round_up(C12, CP)
    C3 = params["conv3"]["w"].shape[0]
    C3p = _round_up(C3, CP)

    GUARD = 128                                   # >= max tap shift (Wp+1); lane aligned
    OUT_P = _round_up(NP, 128)                    # lane-dense compute/store width
    SLAB = GUARD + OUT_P + GUARD

    # ---- framed inputs (built once in XLA; replaces the 1 MB E/M scatter
    #      matrices and their matmuls) ----
    f1 = jnp.zeros((N, C1p, Hp, Wp), jnp.float32)
    f1 = f1.at[:, :C1, 1:H + 1, 1:W + 1].set(x1_nchw.astype(jnp.float32))
    # ConvTranspose2d(k=3, s=2, p=1, op=1) == stride-2 zero dilation + (1, 2)
    # zero padding + flipped-kernel valid conv: coarse (i, j) -> (1+2i, 1+2j).
    f2 = jnp.zeros((N, C2p, Hp, Wp), jnp.float32)
    f2 = f2.at[:, :C2, 1:1 + 2 * H2:2, 1:1 + 2 * W2:2].set(x2_nchw.astype(jnp.float32))

    def to_slab(f, c):
        # stack the N frames side by side on the lane axis, add guard lanes
        s = jnp.transpose(f.reshape(N, c, P), (1, 0, 2)).reshape(c, NP)
        s = jnp.pad(s, ((0, 0), (GUARD, SLAB - GUARD - NP)))
        return s.astype(jnp.bfloat16)

    x1s = to_slab(f1, C1p)
    x2s = to_slab(f2, C2p)

    # ---- border mask: 1 on each frame's interior HxW pixels, 0 on the 1-px
    #      halo ring and on the padded lane tail ----
    interior = np.zeros((Hp, Wp), np.float32)
    interior[1:H + 1, 1:W + 1] = 1.0
    mask_np = np.zeros((1, OUT_P), np.float32)
    mask_np[0, :NP] = np.tile(interior.reshape(-1), N)
    mask = jnp.asarray(mask_np)

    # ---- BN-folded, channel-padded, bf16 weights ----
    s1, b1 = _fold_bn(params["conv1"])
    w1t = params["conv1"]["w"]                                    # (Cin, Cout, 3, 3)
    k1 = jnp.transpose(jnp.flip(w1t, axis=(2, 3)), (1, 2, 3, 0))  # (cout, dy, dx, cin)
    k1 = k1 * s1[:, None, None, None]
    k1p = jnp.zeros((C2p, 3, 3, C2p), jnp.float32).at[:C2, :, :, :C2].set(k1)
    wf1 = k1p.reshape(C2p, 9 * C2p).astype(jnp.bfloat16)
    bc1 = jnp.zeros((C2p, 1), jnp.float32).at[:C2, 0].set(b1)

    s2, b2 = _fold_bn(params["conv2"])
    w2 = params["conv2"]["w"] * s2[:, None, None, None]           # (C12, C12, 3, 3) OIHW
    w2a = jnp.zeros((C12p, C1p, 3, 3), jnp.float32).at[:C12, :C1].set(w2[:, :C1])
    w2b = jnp.zeros((C12p, C2p, 3, 3), jnp.float32).at[:C12, :C2].set(w2[:, C1:])
    wf2a = jnp.transpose(w2a, (0, 2, 3, 1)).reshape(C12p, 9 * C1p).astype(jnp.bfloat16)
    wf2b = jnp.transpose(w2b, (0, 2, 3, 1)).reshape(C12p, 9 * C2p).astype(jnp.bfloat16)
    bc2 = jnp.zeros((C12p, 1), jnp.float32).at[:C12, 0].set(b2)

    s3, b3 = _fold_bn(params["conv3"])
    w3 = params["conv3"]["w"] * s3[:, None, None, None]           # (C3, C12, 3, 3) OIHW
    w3p = jnp.zeros((C3p, C12p, 3, 3), jnp.float32).at[:C3, :C12].set(w3)
    wf3 = jnp.transpose(w3p, (0, 2, 3, 1)).reshape(C3p, 9 * C12p).astype(jnp.bfloat16)
    bc3 = jnp.zeros((C3p, 1), jnp.float32).at[:C3, 0].set(b3)

    kernel = _make_fused_kernel(Wp, GUARD, OUT_P, SLAB)

    flops = 2 * OUT_P * (C2p * 9 * C2p + C12p * 9 * C1p + C12p * 9 * C2p
                         + C3p * 9 * C12p)
    bytes_accessed = (2 * (x1s.size + x2s.size + wf1.size + wf2a.size
                           + wf2b.size + wf3.size)
                      + 4 * (mask.size + bc1.size + bc2.size + bc3.size
                             + C3p * OUT_P))

    out_slab = pl.pallas_call(
        kernel,
        out_shape=jax.ShapeDtypeStruct((C3p, OUT_P), jnp.float32),
        grid_spec=pltpu.PrefetchScalarGridSpec(
            num_scalar_prefetch=0,
            grid=(1,),
            in_specs=[
                pl.BlockSpec((C1p, SLAB), lambda i: (0, 0)),
                pl.BlockSpec((C2p, SLAB), lambda i: (0, 0)),
                pl.BlockSpec((1, OUT_P), lambda i: (0, 0)),
                pl.BlockSpec((C2p, 9 * C2p), lambda i: (0, 0)),
                pl.BlockSpec((C2p, 1), lambda i: (0, 0)),
                pl.BlockSpec((C12p, 9 * C1p), lambda i: (0, 0)),
                pl.BlockSpec((C12p, 9 * C2p), lambda i: (0, 0)),
                pl.BlockSpec((C12p, 1), lambda i: (0, 0)),
                pl.BlockSpec((C3p, 9 * C12p), lambda i: (0, 0)),
                pl.BlockSpec((C3p, 1), lambda i: (0, 0)),
            ],
            out_specs=pl.BlockSpec((C3p, OUT_P), lambda i: (0, 0)),
        ),
        compiler_params=pltpu.CompilerParams(
            dimension_semantics=("arbitrary",)),
        cost_estimate=pl.CostEstimate(flops=flops, transcendentals=0,
                                      bytes_accessed=bytes_accessed),
    )(x1s, x2s, mask, wf1, bc1, wf2a, wf2b, bc2, wf3, bc3)

    # unstack batch from the lane axis, crop padded channels + 1-px halo
    out = out_slab[:, :NP].reshape(C3p, N, P).transpose(1, 0, 2)
    out = out.reshape(N, C3p, Hp, Wp)[:, :C3, 1:H + 1, 1:W + 1]
    return out


# ------------------------- pure-JAX reference path --------------------------- #

def _conv3x3_bn_relu_ref(x_padded, w, scale, bias):
    y = lax.conv_general_dilated(
        x_padded, w, window_strides=(1, 1), padding="VALID",
        dimension_numbers=("NHWC", "HWIO", "NHWC"),
        precision=lax.Precision.HIGHEST)
    y = y * scale.reshape(1, 1, 1, -1) + bias.reshape(1, 1, 1, -1)
    return jnp.maximum(y, 0.0)


def aggregate_block_forward_ref(params, x1_nchw, x2_nchw):
    x1 = jnp.transpose(x1_nchw, (0, 2, 3, 1))
    x2 = jnp.transpose(x2_nchw, (0, 2, 3, 1))
    N, H2, W2, C2 = x2.shape

    # ConvTranspose2d(k=3,s=2,p=1,op=1) = dilate by 2, pad (1,2), flipped-kernel valid conv
    x2_dil = jnp.zeros((N, 2 * H2 - 1, 2 * W2 - 1, C2), x2.dtype)
    x2_dil = x2_dil.at[:, ::2, ::2, :].set(x2)
    x2_pad = jnp.pad(x2_dil, ((0, 0), (1, 2), (1, 2), (0, 0)))
    w_t = params["conv1"]["w"]
    w1 = jnp.transpose(jnp.flip(w_t, axis=(2, 3)), (2, 3, 0, 1))
    s1, b1 = _fold_bn(params["conv1"])
    x2u = _conv3x3_bn_relu_ref(x2_pad, w1, s1, b1)

    x = jnp.concatenate([x1, x2u], axis=-1)
    w2 = jnp.transpose(params["conv2"]["w"], (2, 3, 1, 0))
    s2, b2 = _fold_bn(params["conv2"])
    x = _conv3x3_bn_relu_ref(jnp.pad(x, ((0, 0), (1, 1), (1, 1), (0, 0))), w2, s2, b2)
    w3 = jnp.transpose(params["conv3"]["w"], (2, 3, 1, 0))
    s3, b3 = _fold_bn(params["conv3"])
    x = _conv3x3_bn_relu_ref(jnp.pad(x, ((0, 0), (1, 1), (1, 1), (0, 0))), w3, s3, b3)
    return jnp.transpose(x, (0, 3, 1, 2))


# ---------------------------------- main -------------------------------------- #

if __name__ == "__main__":
    key = jax.random.PRNGKey(0)
    k_p, k_x1, k_x2 = jax.random.split(key, 3)

    N, in_ch1, in_ch2, out_ch, H, W = 2, 4, 8, 8, 16, 16
    params = init_aggregate_block_params(k_p, in_ch1, in_ch2, out_ch)

    # x1 is the fine-resolution feature map, x2 the coarse one (half spatial size).
    x1 = jax.random.normal(k_x1, (N, in_ch1, H, W), jnp.float32)
    x2 = jax.random.normal(k_x2, (N, in_ch2, H // 2, W // 2), jnp.float32)

    # Round params + inputs to bf16-representable values once so the f32
    # reference and the bf16 Pallas path see identical operands; the remaining
    # difference is the kernel's bf16 intermediates with f32 accumulation.
    rq = lambda t: t.astype(jnp.bfloat16).astype(jnp.float32)
    params_q = jax.tree_util.tree_map(rq, params)
    x1_q, x2_q = rq(x1), rq(x2)

    out = aggregate_block_forward_pallas(params_q, x1_q, x2_q)
    out = jax.block_until_ready(out)
    assert out.shape == (N, out_ch, H, W), out.shape

    # Cross-check the fused bf16 Pallas kernel against f32 XLA convs.
    ref = jax.block_until_ready(aggregate_block_forward_ref(params_q, x1_q, x2_q))
    np.testing.assert_allclose(np.asarray(out), np.asarray(ref),
                               rtol=5e-2, atol=5e-2)

    print("KERNEL_OK")
</pallas_src>

<mosaic_0001>
module attributes {stable_mosaic.version = 11 : i64} {
  func.func @kernel(%arg0: i32, %arg1: memref<16x1024xbf16, #tpu.memory_space<vmem>>, %arg2: memref<16x1024xbf16, #tpu.memory_space<vmem>>, %arg3: memref<1x768xf32, #tpu.memory_space<vmem>>, %arg4: memref<16x144xbf16, #tpu.memory_space<vmem>>, %arg5: memref<16x1xf32, #tpu.memory_space<vmem>>, %arg6: memref<16x144xbf16, #tpu.memory_space<vmem>>, %arg7: memref<16x144xbf16, #tpu.memory_space<vmem>>, %arg8: memref<16x1xf32, #tpu.memory_space<vmem>>, %arg9: memref<16x144xbf16, #tpu.memory_space<vmem>>, %arg10: memref<16x1xf32, #tpu.memory_space<vmem>>, %arg11: memref<16x768xf32, #tpu.memory_space<vmem>>) attributes {dimension_semantics = [#tpu.dimension_semantics<arbitrary>], iteration_bounds = array<i64: 1>, scalar_prefetch = 0 : i64, scratch_operands = 0 : i64, tpu.core_type = #tpu.core_type<tc>, window_params = [{pipeline_mode = #tpu.pipeline_mode<synchronous>, transform_indices = @transform_0, window_bounds = array<i64: 16, 1024>}, {pipeline_mode = #tpu.pipeline_mode<synchronous>, transform_indices = @transform_1, window_bounds = array<i64: 16, 1024>}, {pipeline_mode = #tpu.pipeline_mode<synchronous>, transform_indices = @transform_2, window_bounds = array<i64: 1, 768>}, {pipeline_mode = #tpu.pipeline_mode<synchronous>, transform_indices = @transform_3, window_bounds = array<i64: 16, 144>}, {pipeline_mode = #tpu.pipeline_mode<synchronous>, transform_indices = @transform_4, window_bounds = array<i64: 16, 1>}, {pipeline_mode = #tpu.pipeline_mode<synchronous>, transform_indices = @transform_5, window_bounds = array<i64: 16, 144>}, {pipeline_mode = #tpu.pipeline_mode<synchronous>, transform_indices = @transform_6, window_bounds = array<i64: 16, 144>}, {pipeline_mode = #tpu.pipeline_mode<synchronous>, transform_indices = @transform_7, window_bounds = array<i64: 16, 1>}, {pipeline_mode = #tpu.pipeline_mode<synchronous>, transform_indices = @transform_8, window_bounds = array<i64: 16, 144>}, {pipeline_mode = #tpu.pipeline_mode<synchronous>, transform_indices = @transform_9, window_bounds = array<i64: 16, 1>}, {pipeline_mode = #tpu.pipeline_mode<synchronous>, transform_indices = @transform_10, window_bounds = array<i64: 16, 768>}]} {
    %c0 = arith.constant 0 : index
    %c0_0 = arith.constant 0 : index
    %0 = vector.load %arg3[%c0, %c0_0] : memref<1x768xf32, #tpu.memory_space<vmem>>, vector<1x768xf32>
    %c0_1 = arith.constant 0 : index
    %c0_2 = arith.constant 0 : index
    %1 = vector.load %arg1[%c0_1, %c0_2] : memref<16x1024xbf16, #tpu.memory_space<vmem>>, vector<16x1024xbf16>
    %c0_3 = arith.constant 0 : index
    %c0_4 = arith.constant 0 : index
    %2 = vector.load %arg2[%c0_3, %c0_4] : memref<16x1024xbf16, #tpu.memory_space<vmem>>, vector<16x1024xbf16>
    %c0_5 = arith.constant 0 : index
    %c0_6 = arith.constant 0 : index
    %3 = vector.load %arg4[%c0_5, %c0_6] : memref<16x144xbf16, #tpu.memory_space<vmem>>, vector<16x144xbf16>
    %4 = vector.extract_strided_slice %2 {offsets = [0, 109], sizes = [16, 768], strides = [1, 1]} : vector<16x1024xbf16> to vector<16x768xbf16>
    %5 = vector.extract_strided_slice %2 {offsets = [0, 110], sizes = [16, 768], strides = [1, 1]} : vector<16x1024xbf16> to vector<16x768xbf16>
    %6 = vector.extract_strided_slice %2 {offsets = [0, 111], sizes = [16, 768], strides = [1, 1]} : vector<16x1024xbf16> to vector<16x768xbf16>
    %7 = vector.extract_strided_slice %2 {offsets = [0, 127], sizes = [16, 768], strides = [1, 1]} : vector<16x1024xbf16> to vector<16x768xbf16>
    %8 = vector.extract_strided_slice %2 {offsets = [0, 128], sizes = [16, 768], strides = [1, 1]} : vector<16x1024xbf16> to vector<16x768xbf16>
    %9 = vector.extract_strided_slice %2 {offsets = [0, 129], sizes = [16, 768], strides = [1, 1]} : vector<16x1024xbf16> to vector<16x768xbf16>
    %10 = vector.extract_strided_slice %2 {offsets = [0, 145], sizes = [16, 768], strides = [1, 1]} : vector<16x1024xbf16> to vector<16x768xbf16>
    %11 = vector.extract_strided_slice %2 {offsets = [0, 146], sizes = [16, 768], strides = [1, 1]} : vector<16x1024xbf16> to vector<16x768xbf16>
    %12 = vector.extract_strided_slice %2 {offsets = [0, 147], sizes = [16, 768], strides = [1, 1]} : vector<16x1024xbf16> to vector<16x768xbf16>
    %13 = tpu.concatenate %4, %5, %6, %7, %8, %9, %10, %11, %12 in 0 : vector<16x768xbf16>, vector<16x768xbf16>, vector<16x768xbf16>, vector<16x768xbf16>, vector<16x768xbf16>, vector<16x768xbf16>, vector<16x768xbf16>, vector<16x768xbf16>, vector<16x768xbf16> -> vector<144x768xbf16>
    %cst = arith.constant dense<0.000000e+00> : vector<16x768xf32>
    %14 = tpu.matmul %3, %13, %cst {dimension_numbers = #tpu.dot_dimension_numbers<[1], [0], [0], [1], [0, 0, 1, 1], [], []>} : vector<16x144xbf16>, vector<144x768xbf16>, vector<16x768xf32> -> vector<16x768xf32>
    %c0_7 = arith.constant 0 : index
    %c0_8 = arith.constant 0 : index
    %15 = vector.load %arg5[%c0_7, %c0_8] : memref<16x1xf32, #tpu.memory_space<vmem>>, vector<16x1xf32>
    %16 = vector.broadcast %15 : vector<16x1xf32> to vector<16x768xf32>
    %17 = arith.addf %14, %16 : vector<16x768xf32>
    %cst_9 = arith.constant 0.000000e+00 : f32
    %18 = vector.broadcast %cst_9 : f32 to vector<16x768xf32>
    %19 = arith.maximumf %17, %18 : vector<16x768xf32>
    %20 = vector.broadcast %0 : vector<1x768xf32> to vector<16x768xf32>
    %21 = arith.mulf %19, %20 : vector<16x768xf32>
    %22 = arith.truncf %21 : vector<16x768xf32> to vector<16x768xbf16>
    %cst_10 = arith.constant 0.000000e+00 : bf16
    %23 = vector.broadcast %cst_10 : bf16 to vector<16x128xbf16>
    %cst_11 = arith.constant 0.000000e+00 : bf16
    %24 = vector.broadcast %cst_11 : bf16 to vector<16x128xbf16>
    %25 = tpu.concatenate %23, %22, %24 in 1 : vector<16x128xbf16>, vector<16x768xbf16>, vector<16x128xbf16> -> vector<16x1024xbf16>
    %c0_12 = arith.constant 0 : index
    %c0_13 = arith.constant 0 : index
    %26 = vector.load %arg6[%c0_12, %c0_13] : memref<16x144xbf16, #tpu.memory_space<vmem>>, vector<16x144xbf16>
    %27 = vector.extract_strided_slice %1 {offsets = [0, 109], sizes = [16, 768], strides = [1, 1]} : vector<16x1024xbf16> to vector<16x768xbf16>
    %28 = vector.extract_strided_slice %1 {offsets = [0, 110], sizes = [16, 768], strides = [1, 1]} : vector<16x1024xbf16> to vector<16x768xbf16>
    %29 = vector.extract_strided_slice %1 {offsets = [0, 111], sizes = [16, 768], strides = [1, 1]} : vector<16x1024xbf16> to vector<16x768xbf16>
    %30 = vector.extract_strided_slice %1 {offsets = [0, 127], sizes = [16, 768], strides = [1, 1]} : vector<16x1024xbf16> to vector<16x768xbf16>
    %31 = vector.extract_strided_slice %1 {offsets = [0, 128], sizes = [16, 768], strides = [1, 1]} : vector<16x1024xbf16> to vector<16x768xbf16>
    %32 = vector.extract_strided_slice %1 {offsets = [0, 129], sizes = [16, 768], strides = [1, 1]} : vector<16x1024xbf16> to vector<16x768xbf16>
    %33 = vector.extract_strided_slice %1 {offsets = [0, 145], sizes = [16, 768], strides = [1, 1]} : vector<16x1024xbf16> to vector<16x768xbf16>
    %34 = vector.extract_strided_slice %1 {offsets = [0, 146], sizes = [16, 768], strides = [1, 1]} : vector<16x1024xbf16> to vector<16x768xbf16>
    %35 = vector.extract_strided_slice %1 {offsets = [0, 147], sizes = [16, 768], strides = [1, 1]} : vector<16x1024xbf16> to vector<16x768xbf16>
    %36 = tpu.concatenate %27, %28, %29, %30, %31, %32, %33, %34, %35 in 0 : vector<16x768xbf16>, vector<16x768xbf16>, vector<16x768xbf16>, vector<16x768xbf16>, vector<16x768xbf16>, vector<16x768xbf16>, vector<16x768xbf16>, vector<16x768xbf16>, vector<16x768xbf16> -> vector<144x768xbf16>
    %cst_14 = arith.constant dense<0.000000e+00> : vector<16x768xf32>
    %37 = tpu.matmul %26, %36, %cst_14 {dimension_numbers = #tpu.dot_dimension_numbers<[1], [0], [0], [1], [0, 0, 1, 1], [], []>} : vector<16x144xbf16>, vector<144x768xbf16>, vector<16x768xf32> -> vector<16x768xf32>
    %c0_15 = arith.constant 0 : index
    %c0_16 = arith.constant 0 : index
    %38 = vector.load %arg7[%c0_15, %c0_16] : memref<16x144xbf16, #tpu.memory_space<vmem>>, vector<16x144xbf16>
    %39 = vector.extract_strided_slice %25 {offsets = [0, 109], sizes = [16, 768], strides = [1, 1]} : vector<16x1024xbf16> to vector<16x768xbf16>
    %40 = vector.extract_strided_slice %25 {offsets = [0, 110], sizes = [16, 768], strides = [1, 1]} : vector<16x1024xbf16> to vector<16x768xbf16>
    %41 = vector.extract_strided_slice %25 {offsets = [0, 111], sizes = [16, 768], strides = [1, 1]} : vector<16x1024xbf16> to vector<16x768xbf16>
    %42 = vector.extract_strided_slice %25 {offsets = [0, 127], sizes = [16, 768], strides = [1, 1]} : vector<16x1024xbf16> to vector<16x768xbf16>
    %43 = vector.extract_strided_slice %25 {offsets = [0, 128], sizes = [16, 768], strides = [1, 1]} : vector<16x1024xbf16> to vector<16x768xbf16>
    %44 = vector.extract_strided_slice %25 {offsets = [0, 129], sizes = [16, 768], strides = [1, 1]} : vector<16x1024xbf16> to vector<16x768xbf16>
    %45 = vector.extract_strided_slice %25 {offsets = [0, 145], sizes = [16, 768], strides = [1, 1]} : vector<16x1024xbf16> to vector<16x768xbf16>
    %46 = vector.extract_strided_slice %25 {offsets = [0, 146], sizes = [16, 768], strides = [1, 1]} : vector<16x1024xbf16> to vector<16x768xbf16>
    %47 = vector.extract_strided_slice %25 {offsets = [0, 147], sizes = [16, 768], strides = [1, 1]} : vector<16x1024xbf16> to vector<16x768xbf16>
    %48 = tpu.concatenate %39, %40, %41, %42, %43, %44, %45, %46, %47 in 0 : vector<16x768xbf16>, vector<16x768xbf16>, vector<16x768xbf16>, vector<16x768xbf16>, vector<16x768xbf16>, vector<16x768xbf16>, vector<16x768xbf16>, vector<16x768xbf16>, vector<16x768xbf16> -> vector<144x768xbf16>
    %cst_17 = arith.constant dense<0.000000e+00> : vector<16x768xf32>
    %49 = tpu.matmul %38, %48, %cst_17 {dimension_numbers = #tpu.dot_dimension_numbers<[1], [0], [0], [1], [0, 0, 1, 1], [], []>} : vector<16x144xbf16>, vector<144x768xbf16>, vector<16x768xf32> -> vector<16x768xf32>
    %50 = arith.addf %37, %49 : vector<16x768xf32>
    %c0_18 = arith.constant 0 : index
    %c0_19 = arith.constant 0 : index
    %51 = vector.load %arg8[%c0_18, %c0_19] : memref<16x1xf32, #tpu.memory_space<vmem>>, vector<16x1xf32>
    %52 = vector.broadcast %51 : vector<16x1xf32> to vector<16x768xf32>
    %53 = arith.addf %50, %52 : vector<16x768xf32>
    %cst_20 = arith.constant 0.000000e+00 : f32
    %54 = vector.broadcast %cst_20 : f32 to vector<16x768xf32>
    %55 = arith.maximumf %53, %54 : vector<16x768xf32>
    %56 = vector.broadcast %0 : vector<1x768xf32> to vector<16x768xf32>
    %57 = arith.mulf %55, %56 : vector<16x768xf32>
    %58 = arith.truncf %57 : vector<16x768xf32> to vector<16x768xbf16>
    %cst_21 = arith.constant 0.000000e+00 : bf16
    %59 = vector.broadcast %cst_21 : bf16 to vector<16x128xbf16>
    %cst_22 = arith.constant 0.000000e+00 : bf16
    %60 = vector.broadcast %cst_22 : bf16 to vector<16x128xbf16>
    %61 = tpu.concatenate %59, %58, %60 in 1 : vector<16x128xbf16>, vector<16x768xbf16>, vector<16x128xbf16> -> vector<16x1024xbf16>
    %c0_23 = arith.constant 0 : index
    %c0_24 = arith.constant 0 : index
    %62 = vector.load %arg9[%c0_23, %c0_24] : memref<16x144xbf16, #tpu.memory_space<vmem>>, vector<16x144xbf16>
    %63 = vector.extract_strided_slice %61 {offsets = [0, 109], sizes = [16, 768], strides = [1, 1]} : vector<16x1024xbf16> to vector<16x768xbf16>
    %64 = vector.extract_strided_slice %61 {offsets = [0, 110], sizes = [16, 768], strides = [1, 1]} : vector<16x1024xbf16> to vector<16x768xbf16>
    %65 = vector.extract_strided_slice %61 {offsets = [0, 111], sizes = [16, 768], strides = [1, 1]} : vector<16x1024xbf16> to vector<16x768xbf16>
    %66 = vector.extract_strided_slice %61 {offsets = [0, 127], sizes = [16, 768], strides = [1, 1]} : vector<16x1024xbf16> to vector<16x768xbf16>
    %67 = vector.extract_strided_slice %61 {offsets = [0, 128], sizes = [16, 768], strides = [1, 1]} : vector<16x1024xbf16> to vector<16x768xbf16>
    %68 = vector.extract_strided_slice %61 {offsets = [0, 129], sizes = [16, 768], strides = [1, 1]} : vector<16x1024xbf16> to vector<16x768xbf16>
    %69 = vector.extract_strided_slice %61 {offsets = [0, 145], sizes = [16, 768], strides = [1, 1]} : vector<16x1024xbf16> to vector<16x768xbf16>
    %70 = vector.extract_strided_slice %61 {offsets = [0, 146], sizes = [16, 768], strides = [1, 1]} : vector<16x1024xbf16> to vector<16x768xbf16>
    %71 = vector.extract_strided_slice %61 {offsets = [0, 147], sizes = [16, 768], strides = [1, 1]} : vector<16x1024xbf16> to vector<16x768xbf16>
    %72 = tpu.concatenate %63, %64, %65, %66, %67, %68, %69, %70, %71 in 0 : vector<16x768xbf16>, vector<16x768xbf16>, vector<16x768xbf16>, vector<16x768xbf16>, vector<16x768xbf16>, vector<16x768xbf16>, vector<16x768xbf16>, vector<16x768xbf16>, vector<16x768xbf16> -> vector<144x768xbf16>
    %cst_25 = arith.constant dense<0.000000e+00> : vector<16x768xf32>
    %73 = tpu.matmul %62, %72, %cst_25 {dimension_numbers = #tpu.dot_dimension_numbers<[1], [0], [0], [1], [0, 0, 1, 1], [], []>} : vector<16x144xbf16>, vector<144x768xbf16>, vector<16x768xf32> -> vector<16x768xf32>
    %c0_26 = arith.constant 0 : index
    %c0_27 = arith.constant 0 : index
    %74 = vector.load %arg10[%c0_26, %c0_27] : memref<16x1xf32, #tpu.memory_space<vmem>>, vector<16x1xf32>
    %75 = vector.broadcast %74 : vector<16x1xf32> to vector<16x768xf32>
    %76 = arith.addf %73, %75 : vector<16x768xf32>
    %cst_28 = arith.constant 0.000000e+00 : f32
    %77 = vector.broadcast %cst_28 : f32 to vector<16x768xf32>
    %78 = arith.maximumf %76, %77 : vector<16x768xf32>
    %c0_29 = arith.constant 0 : index
    %c0_30 = arith.constant 0 : index
    %79 = vector.load %arg11[%c0_29, %c0_30] : memref<16x768xf32, #tpu.memory_space<vmem>>, vector<16x768xf32>
    tpu.vector_store %arg11[%c0_29, %c0_30], %78 {strides = array<i32>} : memref<16x768xf32, #tpu.memory_space<vmem>>, vector<16x768xf32>,
    return
  }
  func.func @transform_0(%arg0: i32) -> (i32, i32) {
    %c0_i32 = arith.constant 0 : i32
    %c0_i32_0 = arith.constant 0 : i32
    %c0_i32_1 = arith.constant 0 : i32
    return %c0_i32, %c0_i32_0 : i32, i32
  }
  func.func @transform_1(%arg0: i32) -> (i32, i32) {
    %c0_i32 = arith.constant 0 : i32
    %c0_i32_0 = arith.constant 0 : i32
    %c0_i32_1 = arith.constant 0 : i32
    return %c0_i32, %c0_i32_0 : i32, i32
  }
  func.func @transform_2(%arg0: i32) -> (i32, i32) {
    %c0_i32 = arith.constant 0 : i32
    %c0_i32_0 = arith.constant 0 : i32
    %c0_i32_1 = arith.constant 0 : i32
    return %c0_i32, %c0_i32_0 : i32, i32
  }
  func.func @transform_3(%arg0: i32) -> (i32, i32) {
    %c0_i32 = arith.constant 0 : i32
    %c0_i32_0 = arith.constant 0 : i32
    %c0_i32_1 = arith.constant 0 : i32
    return %c0_i32, %c0_i32_0 : i32, i32
  }
  func.func @transform_4(%arg0: i32) -> (i32, i32) {
    %c0_i32 = arith.constant 0 : i32
    %c0_i32_0 = arith.constant 0 : i32
    %c0_i32_1 = arith.constant 0 : i32
    return %c0_i32, %c0_i32_0 : i32, i32
  }
  func.func @transform_5(%arg0: i32) -> (i32, i32) {
    %c0_i32 = arith.constant 0 : i32
    %c0_i32_0 = arith.constant 0 : i32
    %c0_i32_1 = arith.constant 0 : i32
    return %c0_i32, %c0_i32_0 : i32, i32
  }
  func.func @transform_6(%arg0: i32) -> (i32, i32) {
    %c0_i32 = arith.constant 0 : i32
    %c0_i32_0 = arith.constant 0 : i32
    %c0_i32_1 = arith.constant 0 : i32
    return %c0_i32, %c0_i32_0 : i32, i32
  }
  func.func @transform_7(%arg0: i32) -> (i32, i32) {
    %c0_i32 = arith.constant 0 : i32
    %c0_i32_0 = arith.constant 0 : i32
    %c0_i32_1 = arith.constant 0 : i32
    return %c0_i32, %c0_i32_0 : i32, i32
  }
  func.func @transform_8(%arg0: i32) -> (i32, i32) {
    %c0_i32 = arith.constant 0 : i32
    %c0_i32_0 = arith.constant 0 : i32
    %c0_i32_1 = arith.constant 0 : i32
    return %c0_i32, %c0_i32_0 : i32, i32
  }
  func.func @transform_9(%arg0: i32) -> (i32, i32) {
    %c0_i32 = arith.constant 0 : i32
    %c0_i32_0 = arith.constant 0 : i32
    %c0_i32_1 = arith.constant 0 : i32
    return %c0_i32, %c0_i32_0 : i32, i32
  }
  func.func @transform_10(%arg0: i32) -> (i32, i32) {
    %c0_i32 = arith.constant 0 : i32
    %c0_i32_0 = arith.constant 0 : i32
    %c0_i32_1 = arith.constant 0 : i32
    return %c0_i32, %c0_i32_0 : i32, i32
  }
}

</mosaic_0001>

<llo_original>
// kernel: tpu_custom_call.1
$region0: #{tpu_custom_call.1}
  #allocation0 [shape = 'u32[]', space=smem, size = 0x4, offset = 0x4, fixed_abs, tag = 'smem constant byte address 0x4 - core index']
  #allocation1 [shape = 'u32[72,128]{1,0:T(1,128)}', space=vmem, size = 0x9000, scoped, tag = 'internal scratch']
  %s0 = inlined_call_operand.hbm [shape: bf16[16,1024], index: 0, kind: input, shape index: {}]
  %s1 = inlined_call_operand.hbm [shape: bf16[16,1024], index: 1, kind: input, shape index: {}]
  %s2 = inlined_call_operand.hbm [shape: f32[1,768], index: 2, kind: input, shape index: {}]
  %s3 = inlined_call_operand.vmem [shape: bf16[16,144], index: 3, kind: input, shape index: {}]
  %s4 = inlined_call_operand.vmem [shape: f32[16,1], index: 4, kind: input, shape index: {}]
  %s5 = inlined_call_operand.vmem [shape: bf16[16,144], index: 5, kind: input, shape index: {}]
  %s6 = inlined_call_operand.vmem [shape: bf16[16,144], index: 6, kind: input, shape index: {}]
  %s7 = inlined_call_operand.vmem [shape: f32[16,1], index: 7, kind: input, shape index: {}]
  %s8 = inlined_call_operand.hbm [shape: bf16[16,144], index: 8, kind: input, shape index: {}]
  %s9 = inlined_call_operand.vmem [shape: f32[16,1], index: 9, kind: input, shape index: {}]
  %s10 = inlined_call_operand.hbm [shape: f32[16,768], index: 10, kind: output, shape index: {}]
  %s11 = sld [smem:[#allocation0]]
  $region66: #{tpu_custom_call.1} parent=0
    _
  %s13 = ssub.s32 1, %s11
  %s14 = scalar_select 0, %s13, %s11
  $region1: #{tpu_custom_call.1} parent=0
    #allocation2 [shape = 'u8[32768]{0}', space=vmem, size = 0x8000, scoped, tag = 'input window, operand 0, single buffered']
    #allocation3 [shape = 's32[1]{0}', space=sflag, size = 0x4, scoped, tag = 'scoped memory for tpu_custom_call.1']
    #allocation4 [shape = 's32[1]{0}', space=sflag, size = 0x4, scoped, tag = 'scoped memory for tpu_custom_call.1']
    #allocation5 [shape = 'u8[32768]{0}', space=vmem, size = 0x8000, scoped, tag = 'input window, operand 1, single buffered']
    #allocation6 [shape = 's32[1]{0}', space=sflag, size = 0x4, scoped, tag = 'scoped memory for tpu_custom_call.1']
    #allocation7 [shape = 'u8[3072]{0}', space=vmem, size = 0xc00, scoped, tag = 'input window, operand 2, single buffered']
    #allocation8 [shape = 'u8[8192]{0}', space=vmem, size = 0x2000, scoped, tag = 'input window, operand 8, single buffered']
    #allocation9 [shape = 's32[1]{0}', space=sflag, size = 0x4, scoped, tag = 'scoped memory for tpu_custom_call.1']
    #allocation10 [shape = 'u8[49152]{0}', space=vmem, size = 0xc000, scoped, tag = 'output window, operand 0, single buffered']
    %15 = vsyncpa [#allocation3], 0
    %16 = vsyncpa [#allocation6], 0
    %17 = vsyncpa [#allocation9], 0
    %18 = vsyncpa [#allocation4], 0
    // Predicated region
    $region2: #{tpu_custom_call.1} parent=1 // pred_check
      _
    $region3: #{tpu_custom_call.1} parent=1 // pred_check_branch
      %20 = sbr.rel (0) target = $region5
    $region4: #{tpu_custom_call.1} parent=1 // pred_region
      %22 = vsyncadd [#allocation3], 0
      %s23 = sshll.u32 %s0, 4
      %s24 = int_to_ptr.hbm [resolvable:$true] %s23
      %s25 = sshll.u32 [#allocation2], 4
      %s26 = int_to_ptr.vmem [resolvable:$true] %s25
      %31 = dma.hbm_to_vmem [thread:$0]  %s24, 1024, %s26, [#allocation3], 512, 512, 32
    $region5: #{tpu_custom_call.1} parent=1 // pred_fallthru
      _
    // Predicated region
    $region6: #{tpu_custom_call.1} parent=1 // pred_check
      _
    $region7: #{tpu_custom_call.1} parent=1 // pred_check_branch
      %33 = sbr.rel (0) target = $region9
    $region8: #{tpu_custom_call.1} parent=1 // pred_region
      %35 = vsyncadd [#allocation6], 0
      %s36 = sshll.u32 %s1, 4
      %s37 = int_to_ptr.hbm [resolvable:$true] %s36
      %s38 = sshll.u32 [#allocation5], 4
      %s39 = int_to_ptr.vmem [resolvable:$true] %s38
      %44 = dma.hbm_to_vmem [thread:$0]  %s37, 1024, %s39, [#allocation6], 512, 512, 32
    $region9: #{tpu_custom_call.1} parent=1 // pred_fallthru
      _
    // Predicated region
    $region10: #{tpu_custom_call.1} parent=1 // pred_check
      _
    $region11: #{tpu_custom_call.1} parent=1 // pred_check_branch
      %46 = sbr.rel (0) target = $region13
    $region12: #{tpu_custom_call.1} parent=1 // pred_region
      %48 = vsyncadd [#allocation6], 0
      %s50 = sshll.u32 %s2, 4
      %s51 = int_to_ptr.hbm [resolvable:$true] %s50
      %s52 = sshll.u32 [#allocation7], 4
      %s53 = int_to_ptr.vmem [resolvable:$true] %s52
      %55 = dma.hbm_to_vmem [thread:$0]  %s51, 96, %s53, [#allocation6]
    $region13: #{tpu_custom_call.1} parent=1 // pred_fallthru
      _
    // Predicated region
    $region14: #{tpu_custom_call.1} parent=1 // pred_check
      _
    $region15: #{tpu_custom_call.1} parent=1 // pred_check_branch
      %57 = sbr.rel (0) target = $region17
    $region16: #{tpu_custom_call.1} parent=1 // pred_region
      _
    $region17: #{tpu_custom_call.1} parent=1 // pred_fallthru
      _
    // Predicated region
    $region18: #{tpu_custom_call.1} parent=1 // pred_check
      _
    $region19: #{tpu_custom_call.1} parent=1 // pred_check_branch
      %59 = sbr.rel (0) target = $region21
    $region20: #{tpu_custom_call.1} parent=1 // pred_region
      _
    $region21: #{tpu_custom_call.1} parent=1 // pred_fallthru
      _
    // Predicated region
    $region22: #{tpu_custom_call.1} parent=1 // pred_check
      _
    $region23: #{tpu_custom_call.1} parent=1 // pred_check_branch
      %61 = sbr.rel (0) target = $region25
    $region24: #{tpu_custom_call.1} parent=1 // pred_region
      _
    $region25: #{tpu_custom_call.1} parent=1 // pred_fallthru
      _
    // Predicated region
    $region26: #{tpu_custom_call.1} parent=1 // pred_check
      _
    $region27: #{tpu_custom_call.1} parent=1 // pred_check_branch
      %63 = sbr.rel (0) target = $region29
    $region28: #{tpu_custom_call.1} parent=1 // pred_region
      _
    $region29: #{tpu_custom_call.1} parent=1 // pred_fallthru
      _
    // Predicated region
    $region30: #{tpu_custom_call.1} parent=1 // pred_check
      _
    $region31: #{tpu_custom_call.1} parent=1 // pred_check_branch
      %65 = sbr.rel (0) target = $region33
    $region32: #{tpu_custom_call.1} parent=1 // pred_region
      _
    $region33: #{tpu_custom_call.1} parent=1 // pred_fallthru
      _
    // Predicated region
    $region34: #{tpu_custom_call.1} parent=1 // pred_check
      _
    $region35: #{tpu_custom_call.1} parent=1 // pred_check_branch
      %67 = sbr.rel (0) target = $region37
    $region36: #{tpu_custom_call.1} parent=1 // pred_region
      %69 = vsyncadd [#allocation9], 0
      %s70 = sshll.u32 %s8, 4
      %s71 = int_to_ptr.hbm [resolvable:$true] %s70
      %s72 = sshll.u32 [#allocation8], 4
      %s73 = int_to_ptr.vmem [resolvable:$true] %s72
      %78 = dma.hbm_to_vmem [thread:$0]  %s71, 256, %s73, [#allocation9], 128, 128, 8
    $region37: #{tpu_custom_call.1} parent=1 // pred_fallthru
      _
    // Predicated region
    $region38: #{tpu_custom_call.1} parent=1 // pred_check
      _
    $region39: #{tpu_custom_call.1} parent=1 // pred_check_branch
      %80 = sbr.rel (0) target = $region41
    $region40: #{tpu_custom_call.1} parent=1 // pred_region
      _
    $region41: #{tpu_custom_call.1} parent=1 // pred_fallthru
      _
    // Predicated region
    $region42: #{tpu_custom_call.1} parent=1 // pred_check
      _
    $region43: #{tpu_custom_call.1} parent=1 // pred_check_branch
      %82 = sbr.rel (0) target = $region45
    $region44: #{tpu_custom_call.1} parent=1 // pred_region
      %84 = dma.done [#allocation3], 1024
    $region45: #{tpu_custom_call.1} parent=1 // pred_fallthru
      _
    // Predicated region
    $region46: #{tpu_custom_call.1} parent=1 // pred_check
      _
    $region47: #{tpu_custom_call.1} parent=1 // pred_check_branch
      %86 = sbr.rel (0) target = $region49
    $region48: #{tpu_custom_call.1} parent=1 // pred_region
      %88 = dma.done [#allocation6], 1024
    $region49: #{tpu_custom_call.1} parent=1 // pred_fallthru
      _
    // Predicated region
    $region50: #{tpu_custom_call.1} parent=1 // pred_check
      _
    $region51: #{tpu_custom_call.1} parent=1 // pred_check_branch
      %90 = sbr.rel (0) target = $region53
    $region52: #{tpu_custom_call.1} parent=1 // pred_region
      %92 = dma.done [#allocation6], 96
    $region53: #{tpu_custom_call.1} parent=1 // pred_fallthru
      _
    // Predicated region
    $region54: #{tpu_custom_call.1} parent=1 // pred_check
      _
    $region55: #{tpu_custom_call.1} parent=1 // pred_check_branch
      %94 = sbr.rel (0) target = $region57
    $region56: #{tpu_custom_call.1} parent=1 // pred_region
      %96 = dma.done [#allocation9], 256
    $region57: #{tpu_custom_call.1} parent=1 // pred_fallthru
      _
    %v98 = vld [vmem:[#allocation7] sm:$0x3f]
    %v99 = vld [vmem:[#allocation2] sm:$0xff]
    %v100 = vld [vmem:[#allocation2 + $0x8] sm:$0xff]
    %v101 = vld [vmem:[#allocation2 + $0x10] sm:$0xff]
    %v102 = vld [vmem:[#allocation2 + $0x18] sm:$0xff]
    %v103 = vld [vmem:[#allocation2 + $0x20] sm:$0xff]
    %v104 = vld [vmem:[#allocation2 + $0x28] sm:$0xff]
    %v105 = vld [vmem:[#allocation2 + $0x30] sm:$0xff]
    %v106 = vld [vmem:[#allocation2 + $0x38] sm:$0xff]
    %v107 = vld [vmem:[#allocation5] sm:$0xff]
    %v108 = vld [vmem:[#allocation5 + $0x8] sm:$0xff]
    %v109 = vld [vmem:[#allocation5 + $0x10] sm:$0xff]
    %v110 = vld [vmem:[#allocation5 + $0x18] sm:$0xff]
    %v111 = vld [vmem:[#allocation5 + $0x20] sm:$0xff]
    %v112 = vld [vmem:[#allocation5 + $0x28] sm:$0xff]
    %v113 = vld [vmem:[#allocation5 + $0x30] sm:$0xff]
    %v114 = vld [vmem:[#allocation5 + $0x38] sm:$0xff]
    %v115 = vld [vmem:[%s3] sm:$0xff]
    %v116 = vld [vmem:[%s3 + $0x8] sm:$0xff]
    %v125 = vunpack.c.l.b16 %v107
    %v126 = vunpack.c.h.b16 %v107
    %v127 = vunpack.c.l.b16 %v108
    %v128 = vunpack.c.h.b16 %v108
    %v129 = vunpack.c.l.b16 %v109
    %v130 = vunpack.c.h.b16 %v109
    %v131 = vunpack.c.l.b16 %v110
    %v132 = vunpack.c.l.b16 %v111
    %v133 = vunpack.c.h.b16 %v111
    %v134 = vunpack.c.l.b16 %v112
    %v135 = vunpack.c.h.b16 %v112
    %v136 = vunpack.c.l.b16 %v113
    %v137 = vunpack.c.h.b16 %v113
    %v138 = vunpack.c.l.b16 %v114
    %v139 = vpack.c.b16 %v132, %v125
    %v140 = vpack.c.b16 %v133, %v126
    %v141 = vpack.c.b16 %v134, %v127
    %v142 = vpack.c.b16 %v135, %v128
    %v143 = vpack.c.b16 %v136, %v129
    %v144 = vpack.c.b16 %v137, %v130
    %v145 = vpack.c.b16 %v138, %v131
    %146 = vrot.lane.b32.xlu0 %v139, 127
    %v147 = vpop.permute.xlu0 %146
    %148 = vrot.lane.b32.xlu0 %v140, 127
    %v149 = vpop.permute.xlu0 %148
    %150 = vrot.lane.b32.xlu0 %v141, 127
    %v151 = vpop.permute.xlu0 %150
    %152 = vrot.lane.b32.xlu0 %v142, 127
    %v153 = vpop.permute.xlu0 %152
    %154 = vrot.lane.b32.xlu0 %v143, 127
    %v155 = vpop.permute.xlu0 %154
    %156 = vrot.lane.b32.xlu0 %v144, 127
    %v157 = vpop.permute.xlu0 %156
    %158 = vrot.lane.b32.xlu0 %v145, 127
    %v159 = vpop.permute.xlu0 %158
    %vm160 = vcmask 1039360
    %v161 = vsel %vm160, %v147, %v149
    %v162 = vsel %vm160, %v149, %v151
    %v163 = vsel %vm160, %v151, %v153
    %v164 = vsel %vm160, %v153, %v155
    %v165 = vsel %vm160, %v155, %v157
    %v166 = vsel %vm160, %v157, %v159
    %167 = vrot.lane.b32.xlu0 %v139, 126
    %v168 = vpop.permute.xlu0 %167
    %169 = vrot.lane.b32.xlu0 %v140, 126
    %v170 = vpop.permute.xlu0 %169
    %171 = vrot.lane.b32.xlu0 %v141, 126
    %v172 = vpop.permute.xlu0 %171
    %173 = vrot.lane.b32.xlu0 %v142, 126
    %v174 = vpop.permute.xlu0 %173
    %175 = vrot.lane.b32.xlu0 %v143, 126
    %v176 = vpop.permute.xlu0 %175
    %177 = vrot.lane.b32.xlu0 %v144, 126
    %v178 = vpop.permute.xlu0 %177
    %179 = vrot.lane.b32.xlu0 %v145, 126
    %v180 = vpop.permute.xlu0 %179
    %vm181 = vcmask 1031168
    %v182 = vsel %vm181, %v168, %v170
    %v183 = vsel %vm181, %v170, %v172
    %v184 = vsel %vm181, %v172, %v174
    %v185 = vsel %vm181, %v174, %v176
    %v186 = vsel %vm181, %v176, %v178
    %v187 = vsel %vm181, %v178, %v180
    %188 = vrot.lane.b32.xlu0 %v139, 110
    %v189 = vpop.permute.xlu0 %188
    %190 = vrot.lane.b32.xlu0 %v140, 110
    %v191 = vpop.permute.xlu0 %190
    %192 = vrot.lane.b32.xlu0 %v141, 110
    %v193 = vpop.permute.xlu0 %192
    %194 = vrot.lane.b32.xlu0 %v142, 110
    %v195 = vpop.permute.xlu0 %194
    %196 = vrot.lane.b32.xlu0 %v143, 110
    %v197 = vpop.permute.xlu0 %196
    %198 = vrot.lane.b32.xlu0 %v144, 110
    %v199 = vpop.permute.xlu0 %198
    %200 = vrot.lane.b32.xlu0 %v145, 110
    %v201 = vpop.permute.xlu0 %200
    %vm202 = vcmask 900096
    %v203 = vsel %vm202, %v189, %v191
    %v204 = vsel %vm202, %v191, %v193
    %v205 = vsel %vm202, %v193, %v195
    %v206 = vsel %vm202, %v195, %v197
    %v207 = vsel %vm202, %v197, %v199
    %v208 = vsel %vm202, %v199, %v201
    %209 = vrot.lane.b32.xlu0 %v140, 109
    %v210 = vpop.permute.xlu0 %209
    %211 = vrot.lane.b32.xlu0 %v141, 109
    %v212 = vpop.permute.xlu0 %211
    %213 = vrot.lane.b32.xlu0 %v142, 109
    %v214 = vpop.permute.xlu0 %213
    %215 = vrot.lane.b32.xlu0 %v143, 109
    %v216 = vpop.permute.xlu0 %215
    %217 = vrot.lane.b32.xlu0 %v144, 109
    %v218 = vpop.permute.xlu0 %217
    %219 = vrot.lane.b32.xlu0 %v145, 109
    %v220 = vpop.permute.xlu0 %219
    %vm221 = vcmask 891904
    %v222 = vsel %vm221, %v210, %v212
    %v223 = vsel %vm221, %v212, %v214
    %v224 = vsel %vm221, %v214, %v216
    %v225 = vsel %vm221, %v216, %v218
    %v226 = vsel %vm221, %v218, %v220
    %v227 = vunpack.c.h.b16 %v110
    %v228 = vunpack.c.h.b16 %v114
    %v229 = vpack.c.b16 %v228, %v227
    %230 = vrot.lane.b32.xlu0 %v140, 108
    %v231 = vpop.permute.xlu0 %230
    %232 = vrot.lane.b32.xlu0 %v141, 108
    %v233 = vpop.permute.xlu0 %232
    %234 = vrot.lane.b32.xlu0 %v142, 108
    %v235 = vpop.permute.xlu0 %234
    %236 = vrot.lane.b32.xlu0 %v143, 108
    %v237 = vpop.permute.xlu0 %236
    %238 = vrot.lane.b32.xlu0 %v144, 108
    %v239 = vpop.permute.xlu0 %238
    %240 = vrot.lane.b32.xlu0 %v145, 108
    %v241 = vpop.permute.xlu0 %240
    %242 = vrot.lane.b32.xlu0 %v229, 108
    %v243 = vpop.permute.xlu0 %242
    %vm244 = vcmask 883712
    %v245 = vsel %vm244, %v231, %v233
    %v246 = vsel %vm244, %v233, %v235
    %v247 = vsel %vm244, %v235, %v237
    %v248 = vsel %vm244, %v237, %v239
    %v249 = vsel %vm244, %v239, %v241
    %v250 = vsel %vm244, %v241, %v243
    %251 = vrot.lane.b32.xlu0 %v140, 92
    %v252 = vpop.permute.xlu0 %251
    %253 = vrot.lane.b32.xlu0 %v141, 92
    %v254 = vpop.permute.xlu0 %253
    %255 = vrot.lane.b32.xlu0 %v142, 92
    %v256 = vpop.permute.xlu0 %255
    %257 = vrot.lane.b32.xlu0 %v143, 92
    %v258 = vpop.permute.xlu0 %257
    %259 = vrot.lane.b32.xlu0 %v144, 92
    %v260 = vpop.permute.xlu0 %259
    %261 = vrot.lane.b32.xlu0 %v145, 92
    %v262 = vpop.permute.xlu0 %261
    %263 = vrot.lane.b32.xlu0 %v229, 92
    %v264 = vpop.permute.xlu0 %263
    %vm265 = vcmask 752640
    %v266 = vsel %vm265, %v252, %v254
    %v267 = vsel %vm265, %v254, %v256
    %v268 = vsel %vm265, %v256, %v258
    %v269 = vsel %vm265, %v258, %v260
    %v270 = vsel %vm265, %v260, %v262
    %v271 = vsel %vm265, %v262, %v264
    %272 = vrot.lane.b32.xlu0 %v140, 91
    %v273 = vpop.permute.xlu0 %272
    %274 = vrot.lane.b32.xlu0 %v141, 91
    %v275 = vpop.permute.xlu0 %274
    %276 = vrot.lane.b32.xlu0 %v142, 91
    %v277 = vpop.permute.xlu0 %276
    %278 = vrot.lane.b32.xlu0 %v143, 91
    %v279 = vpop.permute.xlu0 %278
    %280 = vrot.lane.b32.xlu0 %v144, 91
    %v281 = vpop.permute.xlu0 %280
    %282 = vrot.lane.b32.xlu0 %v145, 91
    %v283 = vpop.permute.xlu0 %282
    %284 = vrot.lane.b32.xlu0 %v229, 91
    %v285 = vpop.permute.xlu0 %284
    %vm286 = vcmask 744448
    %v287 = vsel %vm286, %v273, %v275
    %v288 = vsel %vm286, %v275, %v277
    %v289 = vsel %vm286, %v277, %v279
    %v290 = vsel %vm286, %v279, %v281
    %v291 = vsel %vm286, %v281, %v283
    %v292 = vsel %vm286, %v283, %v285
    %293 = vrot.lane.b32.xlu0 %v140, 90
    %v294 = vpop.permute.xlu0 %293
    %295 = vrot.lane.b32.xlu0 %v141, 90
    %v296 = vpop.permute.xlu0 %295
    %297 = vrot.lane.b32.xlu0 %v142, 90
    %v298 = vpop.permute.xlu0 %297
    %299 = vrot.lane.b32.xlu0 %v143, 90
    %v300 = vpop.permute.xlu0 %299
    %301 = vrot.lane.b32.xlu0 %v144, 90
    %v302 = vpop.permute.xlu0 %301
    %303 = vrot.lane.b32.xlu0 %v145, 90
    %v304 = vpop.permute.xlu0 %303
    %305 = vrot.lane.b32.xlu0 %v229, 90
    %v306 = vpop.permute.xlu0 %305
    %vm307 = vcmask 736256
    %v308 = vsel %vm307, %v294, %v296
    %v309 = vsel %vm307, %v296, %v298
    %v310 = vsel %vm307, %v298, %v300
    %v311 = vsel %vm307, %v300, %v302
    %v312 = vsel %vm307, %v302, %v304
    %v313 = vsel %vm307, %v304, %v306
    %v314 = vld [vmem:[%s4] sm:$0xff]
    %v315 = vld [vmem:[%s4 + $0x8] sm:$0xff]
    %317 = vset.pattern.permute.xlu0 0
    %318 = vperm.xlu0 %317, %v314
    %v319 = vpop.permute.xlu0 %318
    %322 = vset.pattern.permute.xlu0 0
    %323 = vperm.xlu0 %322, %v315
    %v324 = vpop.permute.xlu0 %323
    %v328 = vunpack.c.l.b16 %v115
    %v329 = vunpack.c.h.b16 %v115
    %v330 = vunpack.c.l.b16 %v116
    %v331 = vunpack.c.h.b16 %v116
    %v332 = vpack.c.b16 %v330, %v328
    %v333 = vpack.c.b16 %v331, %v329
    %335 = vrot.lane.b32.xlu0 %v139, 19
    %v336 = vpop.permute.xlu0 %335
    %337 = vrot.lane.b32.xlu0 %v140, 19
    %v338 = vpop.permute.xlu0 %337
    %339 = vrot.lane.b32.xlu0 %v141, 19
    %v340 = vpop.permute.xlu0 %339
    %341 = vrot.lane.b32.xlu0 %v142, 19
    %v342 = vpop.permute.xlu0 %341
    %343 = vrot.lane.b32.xlu0 %v143, 19
    %v344 = vpop.permute.xlu0 %343
    %345 = vrot.lane.b32.xlu0 %v144, 19
    %v346 = vpop.permute.xlu0 %345
    %347 = vrot.lane.b32.xlu0 %v145, 19
    %v348 = vpop.permute.xlu0 %347
    %349 = vrot.lane.b32.xlu0 %v161, 19
    %v350 = vpop.permute.xlu0 %349
    %351 = vrot.lane.b32.xlu0 %v162, 19
    %v352 = vpop.permute.xlu0 %351
    %353 = vrot.lane.b32.xlu0 %v163, 19
    %v354 = vpop.permute.xlu0 %353
    %355 = vrot.lane.b32.xlu0 %v164, 19
    %v356 = vpop.permute.xlu0 %355
    %357 = vrot.lane.b32.xlu0 %v165, 19
    %v358 = vpop.permute.xlu0 %357
    %359 = vrot.lane.b32.xlu0 %v166, 19
    %v360 = vpop.permute.xlu0 %359
    %361 = vrot.lane.b32.xlu0 %v159, 19
    %v362 = vpop.permute.xlu0 %361
    %363 = vrot.lane.b32.xlu0 %v182, 19
    %v364 = vpop.permute.xlu0 %363
    %365 = vrot.lane.b32.xlu0 %v183, 19
    %v366 = vpop.permute.xlu0 %365
    %367 = vrot.lane.b32.xlu0 %v184, 19
    %v368 = vpop.permute.xlu0 %367
    %369 = vrot.lane.b32.xlu0 %v185, 19
    %v370 = vpop.permute.xlu0 %369
    %371 = vrot.lane.b32.xlu0 %v186, 19
    %v372 = vpop.permute.xlu0 %371
    %373 = vrot.lane.b32.xlu0 %v187, 19
    %v374 = vpop.permute.xlu0 %373
    %375 = vrot.lane.b32.xlu0 %v180, 19
    %v376 = vpop.permute.xlu0 %375
    %377 = vrot.lane.b32.xlu0 %v203, 19
    %v378 = vpop.permute.xlu0 %377
    %379 = vrot.lane.b32.xlu0 %v204, 19
    %v380 = vpop.permute.xlu0 %379
    %381 = vrot.lane.b32.xlu0 %v205, 19
    %v382 = vpop.permute.xlu0 %381
    %383 = vrot.lane.b32.xlu0 %v206, 19
    %v384 = vpop.permute.xlu0 %383
    %385 = vrot.lane.b32.xlu0 %v207, 19
    %v386 = vpop.permute.xlu0 %385
    %387 = vrot.lane.b32.xlu0 %v208, 19
    %v388 = vpop.permute.xlu0 %387
    %389 = vrot.lane.b32.xlu0 %v201, 19
    %v390 = vpop.permute.xlu0 %389
    %391 = vrot.lane.b32.xlu0 %v210, 19
    %v392 = vpop.permute.xlu0 %391
    %393 = vrot.lane.b32.xlu0 %v222, 19
    %v394 = vpop.permute.xlu0 %393
    %395 = vrot.lane.b32.xlu0 %v223, 19
    %v396 = vpop.permute.xlu0 %395
    %397 = vrot.lane.b32.xlu0 %v224, 19
    %v398 = vpop.permute.xlu0 %397
    %399 = vrot.lane.b32.xlu0 %v225, 19
    %v400 = vpop.permute.xlu0 %399
    %401 = vrot.lane.b32.xlu0 %v226, 19
    %v402 = vpop.permute.xlu0 %401
    %403 = vrot.lane.b32.xlu0 %v220, 19
    %v404 = vpop.permute.xlu0 %403
    %405 = vrot.lane.b32.xlu0 %v231, 19
    %v406 = vpop.permute.xlu0 %405
    %407 = vrot.lane.b32.xlu0 %v245, 19
    %v408 = vpop.permute.xlu0 %407
    %409 = vrot.lane.b32.xlu0 %v246, 19
    %v410 = vpop.permute.xlu0 %409
    %411 = vrot.lane.b32.xlu0 %v247, 19
    %v412 = vpop.permute.xlu0 %411
    %413 = vrot.lane.b32.xlu0 %v248, 19
    %v414 = vpop.permute.xlu0 %413
    %415 = vrot.lane.b32.xlu0 %v249, 19
    %v416 = vpop.permute.xlu0 %415
    %417 = vrot.lane.b32.xlu0 %v250, 19
    %v418 = vpop.permute.xlu0 %417
    %419 = vrot.lane.b32.xlu0 %v252, 19
    %v420 = vpop.permute.xlu0 %419
    %421 = vrot.lane.b32.xlu0 %v266, 19
    %v422 = vpop.permute.xlu0 %421
    %423 = vrot.lane.b32.xlu0 %v267, 19
    %v424 = vpop.permute.xlu0 %423
    %425 = vrot.lane.b32.xlu0 %v268, 19
    %v426 = vpop.permute.xlu0 %425
    %427 = vrot.lane.b32.xlu0 %v269, 19
    %v428 = vpop.permute.xlu0 %427
    %429 = vrot.lane.b32.xlu0 %v270, 19
    %v430 = vpop.permute.xlu0 %429
    %431 = vrot.lane.b32.xlu0 %v271, 19
    %v432 = vpop.permute.xlu0 %431
    %433 = vrot.lane.b32.xlu0 %v273, 19
    %v434 = vpop.permute.xlu0 %433
    %435 = vrot.lane.b32.xlu0 %v287, 19
    %v436 = vpop.permute.xlu0 %435
    %437 = vrot.lane.b32.xlu0 %v288, 19
    %v438 = vpop.permute.xlu0 %437
    %439 = vrot.lane.b32.xlu0 %v289, 19
    %v440 = vpop.permute.xlu0 %439
    %441 = vrot.lane.b32.xlu0 %v290, 19
    %v442 = vpop.permute.xlu0 %441
    %443 = vrot.lane.b32.xlu0 %v291, 19
    %v444 = vpop.permute.xlu0 %443
    %445 = vrot.lane.b32.xlu0 %v292, 19
    %v446 = vpop.permute.xlu0 %445
    %447 = vrot.lane.b32.xlu0 %v294, 19
    %v448 = vpop.permute.xlu0 %447
    %449 = vrot.lane.b32.xlu0 %v308, 19
    %v450 = vpop.permute.xlu0 %449
    %451 = vrot.lane.b32.xlu0 %v309, 19
    %v452 = vpop.permute.xlu0 %451
    %453 = vrot.lane.b32.xlu0 %v310, 19
    %v454 = vpop.permute.xlu0 %453
    %455 = vrot.lane.b32.xlu0 %v311, 19
    %v456 = vpop.permute.xlu0 %455
    %457 = vrot.lane.b32.xlu0 %v312, 19
    %v458 = vpop.permute.xlu0 %457
    %459 = vrot.lane.b32.xlu0 %v313, 19
    %v460 = vpop.permute.xlu0 %459
    %vm461 = vcmask 154624
    %v462 = vsel %vm461, %v336, %v338
    %v463 = vsel %vm461, %v338, %v340
    %v464 = vsel %vm461, %v340, %v342
    %v465 = vsel %vm461, %v342, %v344
    %v466 = vsel %vm461, %v344, %v346
    %v467 = vsel %vm461, %v346, %v348
    %v468 = vsel %vm461, %v350, %v352
    %v469 = vsel %vm461, %v352, %v354
    %v470 = vsel %vm461, %v354, %v356
    %v471 = vsel %vm461, %v356, %v358
    %v472 = vsel %vm461, %v358, %v360
    %v473 = vsel %vm461, %v360, %v362
    %v474 = vsel %vm461, %v364, %v366
    %v475 = vsel %vm461, %v366, %v368
    %v476 = vsel %vm461, %v368, %v370
    %v477 = vsel %vm461, %v370, %v372
    %v478 = vsel %vm461, %v372, %v374
    %v479 = vsel %vm461, %v374, %v376
    %v480 = vsel %vm461, %v378, %v380
    %v481 = vsel %vm461, %v380, %v382
    %v482 = vsel %vm461, %v382, %v384
    %v483 = vsel %vm461, %v384, %v386
    %v484 = vsel %vm461, %v386, %v388
    %v485 = vsel %vm461, %v388, %v390
    %v486 = vsel %vm461, %v392, %v394
    %v487 = vsel %vm461, %v394, %v396
    %v488 = vsel %vm461, %v396, %v398
    %v489 = vsel %vm461, %v398, %v400
    %v490 = vsel %vm461, %v400, %v402
    %v491 = vsel %vm461, %v402, %v404
    %v492 = vsel %vm461, %v406, %v408
    %v493 = vsel %vm461, %v408, %v410
    %v494 = vsel %vm461, %v410, %v412
    %v495 = vsel %vm461, %v412, %v414
    %v496 = vsel %vm461, %v414, %v416
    %v497 = vsel %vm461, %v416, %v418
    %v498 = vsel %vm461, %v420, %v422
    %v499 = vsel %vm461, %v422, %v424
    %v500 = vsel %vm461, %v424, %v426
    %v501 = vsel %vm461, %v426, %v428
    %v502 = vsel %vm461, %v428, %v430
    %v503 = vsel %vm461, %v430, %v432
    %v504 = vsel %vm461, %v434, %v436
    %v505 = vsel %vm461, %v436, %v438
    %v506 = vsel %vm461, %v438, %v440
    %v507 = vsel %vm461, %v440, %v442
    %v508 = vsel %vm461, %v442, %v444
    %v509 = vsel %vm461, %v444, %v446
    %v510 = vsel %vm461, %v448, %v450
    %v511 = vsel %vm461, %v450, %v452
    %v512 = vsel %vm461, %v452, %v454
    %v513 = vsel %vm461, %v454, %v456
    %v514 = vsel %vm461, %v456, %v458
    %v515 = vsel %vm461, %v458, %v460
    %vm570 = vcmask 130048
    %v572 = vsel %vm570, %v333, 0
    %574 = vmatpush.bf16.msra.mxu0 %v504
    %575 = vmatpush.bf16.msra.mxu0 %v498
    %576 = vmatpush.bf16.msra.mxu0 %v492
    %577 = vmatpush.bf16.msra.mxu0 %v486
    %578 = vmatpush.bf16.msra.mxu0 %v480
    %579 = vmatpush.bf16.msra.mxu0 %v474
    %580 = vmatpush.bf16.msra.mxu0 %v468
    %581 = vmatpush.bf16.msra.mxu0 %v462
    %582 = vmatmul.bf16.gmra.mxu0 %v332
    %v583 = vpop.f32.mrf.mxu0
    %v584 = vadd.f32 %v319, %v583
    %v585 = vpop.f32.mrf.mxu0
    %v586 = vadd.f32 %v324, %v585
    %587 = vdwg.mxu0
    %588 = vmatpush.bf16.msra.mxu0 0
    %589 = vmatpush.bf16.msra.mxu0 0
    %590 = vmatpush.bf16.msra.mxu0 0
    %591 = vmatpush.bf16.msra.mxu0 0
    %592 = vmatpush.bf16.msra.mxu0 0
    %593 = vmatpush.bf16.msra.mxu0 0
    %594 = vmatpush.bf16.msra.mxu0 0
    %595 = vmatpush.bf16.msra.mxu0 %v510
    %596 = vmatmul.bf16.gmra.mxu0 %v572
    %v597 = vpop.f32.mrf.mxu0
    %v598 = vadd.f32 %v584, %v597
    %v599 = vpop.f32.mrf.mxu0
    %v600 = vadd.f32 %v586, %v599
    %601 = vdwg.mxu0
    %602 = vmatpush.bf16.msra.mxu0 %v505
    %603 = vmatpush.bf16.msra.mxu0 %v499
    %604 = vmatpush.bf16.msra.mxu0 %v493
    %605 = vmatpush.bf16.msra.mxu0 %v487
    %606 = vmatpush.bf16.msra.mxu0 %v481
    %607 = vmatpush.bf16.msra.mxu0 %v475
    %608 = vmatpush.bf16.msra.mxu0 %v469
    %609 = vmatpush.bf16.msra.mxu0 %v463
    %610 = vmatmul.bf16.gmra.mxu0 %v332
    %v611 = vpop.f32.mrf.mxu0
    %v612 = vadd.f32 %v319, %v611
    %v613 = vpop.f32.mrf.mxu0
    %v614 = vadd.f32 %v324, %v613
    %615 = vdwg.mxu0
    %616 = vmatpush.bf16.msra.mxu0 0
    %617 = vmatpush.bf16.msra.mxu0 0
    %618 = vmatpush.bf16.msra.mxu0 0
    %619 = vmatpush.bf16.msra.mxu0 0
    %620 = vmatpush.bf16.msra.mxu0 0
    %621 = vmatpush.bf16.msra.mxu0 0
    %622 = vmatpush.bf16.msra.mxu0 0
    %623 = vmatpush.bf16.msra.mxu0 %v511
    %624 = vmatmul.bf16.gmra.mxu0 %v572
    %v625 = vpop.f32.mrf.mxu0
    %v626 = vadd.f32 %v612, %v625
    %v627 = vpop.f32.mrf.mxu0
    %v628 = vadd.f32 %v614, %v627
    %629 = vdwg.mxu0
    %630 = vmatpush.bf16.msra.mxu0 %v506
    %631 = vmatpush.bf16.msra.mxu0 %v500
    %632 = vmatpush.bf16.msra.mxu0 %v494
    %633 = vmatpush.bf16.msra.mxu0 %v488
    %634 = vmatpush.bf16.msra.mxu0 %v482
    %635 = vmatpush.bf16.msra.mxu0 %v476
    %636 = vmatpush.bf16.msra.mxu0 %v470
    %637 = vmatpush.bf16.msra.mxu0 %v464
    %638 = vmatmul.bf16.gmra.mxu0 %v332
    %v639 = vpop.f32.mrf.mxu0
    %v640 = vadd.f32 %v319, %v639
    %v641 = vpop.f32.mrf.mxu0
    %v642 = vadd.f32 %v324, %v641
    %643 = vdwg.mxu0
    %644 = vmatpush.bf16.msra.mxu0 0
    %645 = vmatpush.bf16.msra.mxu0 0
    %646 = vmatpush.bf16.msra.mxu0 0
    %647 = vmatpush.bf16.msra.mxu0 0
    %648 = vmatpush.bf16.msra.mxu0 0
    %649 = vmatpush.bf16.msra.mxu0 0
    %650 = vmatpush.bf16.msra.mxu0 0
    %651 = vmatpush.bf16.msra.mxu0 %v512
    %652 = vmatmul.bf16.gmra.mxu0 %v572
    %v653 = vpop.f32.mrf.mxu0
    %v654 = vadd.f32 %v640, %v653
    %v655 = vpop.f32.mrf.mxu0
    %v656 = vadd.f32 %v642, %v655
    %657 = vdwg.mxu0
    %658 = vmatpush.bf16.msra.mxu0 %v507
    %659 = vmatpush.bf16.msra.mxu0 %v501
    %660 = vmatpush.bf16.msra.mxu0 %v495
    %661 = vmatpush.bf16.msra.mxu0 %v489
    %662 = vmatpush.bf16.msra.mxu0 %v483
    %663 = vmatpush.bf16.msra.mxu0 %v477
    %664 = vmatpush.bf16.msra.mxu0 %v471
    %665 = vmatpush.bf16.msra.mxu0 %v465
    %666 = vmatmul.bf16.gmra.mxu0 %v332
    %v667 = vpop.f32.mrf.mxu0
    %v668 = vadd.f32 %v319, %v667
    %v669 = vpop.f32.mrf.mxu0
    %v670 = vadd.f32 %v324, %v669
    %671 = vdwg.mxu0
    %672 = vmatpush.bf16.msra.mxu0 0
    %673 = vmatpush.bf16.msra.mxu0 0
    %674 = vmatpush.bf16.msra.mxu0 0
    %675 = vmatpush.bf16.msra.mxu0 0
    %676 = vmatpush.bf16.msra.mxu0 0
    %677 = vmatpush.bf16.msra.mxu0 0
    %678 = vmatpush.bf16.msra.mxu0 0
    %679 = vmatpush.bf16.msra.mxu0 %v513
    %680 = vmatmul.bf16.gmra.mxu0 %v572
    %v681 = vpop.f32.mrf.mxu0
    %v682 = vadd.f32 %v668, %v681
    %v683 = vpop.f32.mrf.mxu0
    %v684 = vadd.f32 %v670, %v683
    %685 = vdwg.mxu0
    %686 = vmatpush.bf16.msra.mxu0 %v508
    %687 = vmatpush.bf16.msra.mxu0 %v502
    %688 = vmatpush.bf16.msra.mxu0 %v496
    %689 = vmatpush.bf16.msra.mxu0 %v490
    %690 = vmatpush.bf16.msra.mxu0 %v484
    %691 = vmatpush.bf16.msra.mxu0 %v478
    %692 = vmatpush.bf16.msra.mxu0 %v472
    %693 = vmatpush.bf16.msra.mxu0 %v466
    %694 = vmatmul.bf16.gmra.mxu0 %v332
    %v695 = vpop.f32.mrf.mxu0
    %v696 = vadd.f32 %v319, %v695
    %v697 = vpop.f32.mrf.mxu0
    %v698 = vadd.f32 %v324, %v697
    %699 = vdwg.mxu0
    %700 = vmatpush.bf16.msra.mxu0 0
    %701 = vmatpush.bf16.msra.mxu0 0
    %702 = vmatpush.bf16.msra.mxu0 0
    %703 = vmatpush.bf16.msra.mxu0 0
    %704 = vmatpush.bf16.msra.mxu0 0
    %705 = vmatpush.bf16.msra.mxu0 0
    %706 = vmatpush.bf16.msra.mxu0 0
    %707 = vmatpush.bf16.msra.mxu0 %v514
    %708 = vmatmul.bf16.gmra.mxu0 %v572
    %v709 = vpop.f32.mrf.mxu0
    %v710 = vadd.f32 %v696, %v709
    %v711 = vpop.f32.mrf.mxu0
    %v712 = vadd.f32 %v698, %v711
    %713 = vdwg.mxu0
    %714 = vmatpush.bf16.msra.mxu0 %v509
    %715 = vmatpush.bf16.msra.mxu0 %v503
    %716 = vmatpush.bf16.msra.mxu0 %v497
    %717 = vmatpush.bf16.msra.mxu0 %v491
    %718 = vmatpush.bf16.msra.mxu0 %v485
    %719 = vmatpush.bf16.msra.mxu0 %v479
    %720 = vmatpush.bf16.msra.mxu0 %v473
    %721 = vmatpush.bf16.msra.mxu0 %v467
    %722 = vmatmul.bf16.gmra.mxu0 %v332
    %v723 = vpop.f32.mrf.mxu0
    %v724 = vadd.f32 %v319, %v723
    %v725 = vpop.f32.mrf.mxu0
    %v726 = vadd.f32 %v324, %v725
    %727 = vdwg.mxu0
    %728 = vmatpush.bf16.msra.mxu0 0
    %729 = vmatpush.bf16.msra.mxu0 0
    %730 = vmatpush.bf16.msra.mxu0 0
    %731 = vmatpush.bf16.msra.mxu0 0
    %732 = vmatpush.bf16.msra.mxu0 0
    %733 = vmatpush.bf16.msra.mxu0 0
    %734 = vmatpush.bf16.msra.mxu0 0
    %735 = vmatpush.bf16.msra.mxu0 %v515
    %736 = vmatmul.bf16.gmra.mxu0 %v572
    %v737 = vpop.f32.mrf.mxu0
    %v738 = vadd.f32 %v724, %v737
    %v739 = vpop.f32.mrf.mxu0
    %v740 = vadd.f32 %v726, %v739
    %741 = vdwg.mxu0
    %v742 = vmax.f32 %v598, 0.0
    %v743 = vmax.f32 %v626, 0.0
    %v744 = vmax.f32 %v654, 0.0
    %v745 = vmax.f32 %v682, 0.0
    %v746 = vmax.f32 %v710, 0.0
    %v747 = vmax.f32 %v738, 0.0
    %v748 = vmax.f32 %v600, 0.0
    %v749 = vmax.f32 %v628, 0.0
    %v750 = vmax.f32 %v656, 0.0
    %v751 = vmax.f32 %v684, 0.0
    %v752 = vmax.f32 %v712, 0.0
    %v753 = vmax.f32 %v740, 0.0
    %v755 = vperm.slane %v98, 0
    %v756 = vperm.slane %v98, 1
    %v757 = vperm.slane %v98, 2
    %v758 = vperm.slane %v98, 3
    %v759 = vperm.slane %v98, 4
    %v760 = vperm.slane %v98, 5
    %v767 = vmul.f32 %v742, %v755
    %v768 = vmul.f32 %v743, %v756
    %v769 = vmul.f32 %v744, %v757
    %v770 = vmul.f32 %v745, %v758
    %v771 = vmul.f32 %v746, %v759
    %v772 = vmul.f32 %v747, %v760
    %v773 = vmul.f32 %v748, %v755
    %v774 = vmul.f32 %v749, %v756
    %v775 = vmul.f32 %v750, %v757
    %v776 = vmul.f32 %v751, %v758
    %v777 = vmul.f32 %v752, %v759
    %v778 = vmul.f32 %v753, %v760
    %v779 = vpack.c.bf16 %v768, %v767
    %v780 = vpack.c.bf16 %v770, %v769
    %v781 = vpack.c.bf16 %v772, %v771
    %v782 = vpack.c.bf16 %v774, %v773
    %v783 = vpack.c.bf16 %v776, %v775
    %v784 = vpack.c.bf16 %v778, %v777
    %v791 = vunpack.c.l.b16 %v779
    %v792 = vunpack.c.h.b16 %v779
    %v793 = vunpack.c.l.b16 %v780
    %v794 = vunpack.c.h.b16 %v780
    %v795 = vunpack.c.l.b16 %v781
    %v796 = vunpack.c.h.b16 %v781
    %v797 = vunpack.c.l.b16 %v782
    %v798 = vunpack.c.h.b16 %v782
    %v799 = vunpack.c.l.b16 %v783
    %v800 = vunpack.c.h.b16 %v783
    %v801 = vunpack.c.l.b16 %v784
    %v802 = vunpack.c.h.b16 %v784
    %v803 = vpack.c.b16 %v797, %v791
    %v804 = vpack.c.b16 %v798, %v792
    %v805 = vpack.c.b16 %v799, %v793
    %v806 = vpack.c.b16 %v800, %v794
    %v807 = vpack.c.b16 %v801, %v795
    %v808 = vpack.c.b16 %v802, %v796
    %v809 = vld [vmem:[%s5] sm:$0xff]
    %v810 = vld [vmem:[%s5 + $0x8] sm:$0xff]
    %v819 = vunpack.c.l.b16 %v99
    %v820 = vunpack.c.h.b16 %v99
    %v821 = vunpack.c.l.b16 %v100
    %v822 = vunpack.c.h.b16 %v100
    %v823 = vunpack.c.l.b16 %v101
    %v824 = vunpack.c.h.b16 %v101
    %v825 = vunpack.c.l.b16 %v102
    %v826 = vunpack.c.l.b16 %v103
    %v827 = vunpack.c.h.b16 %v103
    %v828 = vunpack.c.l.b16 %v104
    %v829 = vunpack.c.h.b16 %v104
    %v830 = vunpack.c.l.b16 %v105
    %v831 = vunpack.c.h.b16 %v105
    %v832 = vunpack.c.l.b16 %v106
    %v833 = vpack.c.b16 %v826, %v819
    %v834 = vpack.c.b16 %v827, %v820
    %v835 = vpack.c.b16 %v828, %v821
    %v836 = vpack.c.b16 %v829, %v822
    %v837 = vpack.c.b16 %v830, %v823
    %v838 = vpack.c.b16 %v831, %v824
    %v839 = vpack.c.b16 %v832, %v825
    %840 = vrot.lane.b32.xlu0 %v833, 127
    %v841 = vpop.permute.xlu0 %840
    %842 = vrot.lane.b32.xlu0 %v834, 127
    %v843 = vpop.permute.xlu0 %842
    %844 = vrot.lane.b32.xlu0 %v835, 127
    %v845 = vpop.permute.xlu0 %844
    %846 = vrot.lane.b32.xlu0 %v836, 127
    %v847 = vpop.permute.xlu0 %846
    %848 = vrot.lane.b32.xlu0 %v837, 127
    %v849 = vpop.permute.xlu0 %848
    %850 = vrot.lane.b32.xlu0 %v838, 127
    %v851 = vpop.permute.xlu0 %850
    %852 = vrot.lane.b32.xlu0 %v839, 127
    %v853 = vpop.permute.xlu0 %852
    %v854 = vsel %vm160, %v841, %v843
    %v855 = vsel %vm160, %v843, %v845
    %v856 = vsel %vm160, %v845, %v847
    %v857 = vsel %vm160, %v847, %v849
    %v858 = vsel %vm160, %v849, %v851
    %v859 = vsel %vm160, %v851, %v853
    %860 = vrot.lane.b32.xlu0 %v833, 126
    %v861 = vpop.permute.xlu0 %860
    %862 = vrot.lane.b32.xlu0 %v834, 126
    %v863 = vpop.permute.xlu0 %862
    %864 = vrot.lane.b32.xlu0 %v835, 126
    %v865 = vpop.permute.xlu0 %864
    %866 = vrot.lane.b32.xlu0 %v836, 126
    %v867 = vpop.permute.xlu0 %866
    %868 = vrot.lane.b32.xlu0 %v837, 126
    %v869 = vpop.permute.xlu0 %868
    %870 = vrot.lane.b32.xlu0 %v838, 126
    %v871 = vpop.permute.xlu0 %870
    %872 = vrot.lane.b32.xlu0 %v839, 126
    %v873 = vpop.permute.xlu0 %872
    %v874 = vsel %vm181, %v861, %v863
    %v875 = vsel %vm181, %v863, %v865
    %v876 = vsel %vm181, %v865, %v867
    %v877 = vsel %vm181, %v867, %v869
    %v878 = vsel %vm181, %v869, %v871
    %v879 = vsel %vm181, %v871, %v873
    %880 = vrot.lane.b32.xlu0 %v833, 110
    %v881 = vpop.permute.xlu0 %880
    %882 = vrot.lane.b32.xlu0 %v834, 110
    %v883 = vpop.permute.xlu0 %882
    %884 = vrot.lane.b32.xlu0 %v835, 110
    %v885 = vpop.permute.xlu0 %884
    %886 = vrot.lane.b32.xlu0 %v836, 110
    %v887 = vpop.permute.xlu0 %886
    %888 = vrot.lane.b32.xlu0 %v837, 110
    %v889 = vpop.permute.xlu0 %888
    %890 = vrot.lane.b32.xlu0 %v838, 110
    %v891 = vpop.permute.xlu0 %890
    %892 = vrot.lane.b32.xlu0 %v839, 110
    %v893 = vpop.permute.xlu0 %892
    %v894 = vsel %vm202, %v881, %v883
    %v895 = vsel %vm202, %v883, %v885
    %v896 = vsel %vm202, %v885, %v887
    %v897 = vsel %vm202, %v887, %v889
    %v898 = vsel %vm202, %v889, %v891
    %v899 = vsel %vm202, %v891, %v893
    %900 = vrot.lane.b32.xlu0 %v834, 109
    %v901 = vpop.permute.xlu0 %900
    %902 = vrot.lane.b32.xlu0 %v835, 109
    %v903 = vpop.permute.xlu0 %902
    %904 = vrot.lane.b32.xlu0 %v836, 109
    %v905 = vpop.permute.xlu0 %904
    %906 = vrot.lane.b32.xlu0 %v837, 109
    %v907 = vpop.permute.xlu0 %906
    %908 = vrot.lane.b32.xlu0 %v838, 109
    %v909 = vpop.permute.xlu0 %908
    %910 = vrot.lane.b32.xlu0 %v839, 109
    %v911 = vpop.permute.xlu0 %910
    %v912 = vsel %vm221, %v901, %v903
    %v913 = vsel %vm221, %v903, %v905
    %v914 = vsel %vm221, %v905, %v907
    %v915 = vsel %vm221, %v907, %v909
    %v916 = vsel %vm221, %v909, %v911
    %v917 = vunpack.c.h.b16 %v102
    %v918 = vunpack.c.h.b16 %v106
    %v919 = vpack.c.b16 %v918, %v917
    %920 = vrot.lane.b32.xlu0 %v834, 108
    %v921 = vpop.permute.xlu0 %920
    %922 = vrot.lane.b32.xlu0 %v835, 108
    %v923 = vpop.permute.xlu0 %922
    %924 = vrot.lane.b32.xlu0 %v836, 108
    %v925 = vpop.permute.xlu0 %924
    %926 = vrot.lane.b32.xlu0 %v837, 108
    %v927 = vpop.permute.xlu0 %926
    %928 = vrot.lane.b32.xlu0 %v838, 108
    %v929 = vpop.permute.xlu0 %928
    %930 = vrot.lane.b32.xlu0 %v839, 108
    %v931 = vpop.permute.xlu0 %930
    %932 = vrot.lane.b32.xlu0 %v919, 108
    %v933 = vpop.permute.xlu0 %932
    %v934 = vsel %vm244, %v921, %v923
    %v935 = vsel %vm244, %v923, %v925
    %v936 = vsel %vm244, %v925, %v927
    %v937 = vsel %vm244, %v927, %v929
    %v938 = vsel %vm244, %v929, %v931
    %v939 = vsel %vm244, %v931, %v933
    %940 = vrot.lane.b32.xlu0 %v834, 92
    %v941 = vpop.permute.xlu0 %940
    %942 = vrot.lane.b32.xlu0 %v835, 92
    %v943 = vpop.permute.xlu0 %942
    %944 = vrot.lane.b32.xlu0 %v836, 92
    %v945 = vpop.permute.xlu0 %944
    %946 = vrot.lane.b32.xlu0 %v837, 92
    %v947 = vpop.permute.xlu0 %946
    %948 = vrot.lane.b32.xlu0 %v838, 92
    %v949 = vpop.permute.xlu0 %948
    %950 = vrot.lane.b32.xlu0 %v839, 92
    %v951 = vpop.permute.xlu0 %950
    %952 = vrot.lane.b32.xlu0 %v919, 92
    %v953 = vpop.permute.xlu0 %952
    %v954 = vsel %vm265, %v941, %v943
    %v955 = vsel %vm265, %v943, %v945
    %v956 = vsel %vm265, %v945, %v947
    %v957 = vsel %vm265, %v947, %v949
    %v958 = vsel %vm265, %v949, %v951
    %v959 = vsel %vm265, %v951, %v953
    %960 = vrot.lane.b32.xlu0 %v834, 91
    %v961 = vpop.permute.xlu0 %960
    %962 = vrot.lane.b32.xlu0 %v835, 91
    %v963 = vpop.permute.xlu0 %962
    %964 = vrot.lane.b32.xlu0 %v836, 91
    %v965 = vpop.permute.xlu0 %964
    %966 = vrot.lane.b32.xlu0 %v837, 91
    %v967 = vpop.permute.xlu0 %966
    %968 = vrot.lane.b32.xlu0 %v838, 91
    %v969 = vpop.permute.xlu0 %968
    %970 = vrot.lane.b32.xlu0 %v839, 91
    %v971 = vpop.permute.xlu0 %970
    %972 = vrot.lane.b32.xlu0 %v919, 91
    %v973 = vpop.permute.xlu0 %972
    %v974 = vsel %vm286, %v961, %v963
    %v975 = vsel %vm286, %v963, %v965
    %v976 = vsel %vm286, %v965, %v967
    %v977 = vsel %vm286, %v967, %v969
    %v978 = vsel %vm286, %v969, %v971
    %v979 = vsel %vm286, %v971, %v973
    %980 = vrot.lane.b32.xlu0 %v834, 90
    %v981 = vpop.permute.xlu0 %980
    %982 = vrot.lane.b32.xlu0 %v835, 90
    %v983 = vpop.permute.xlu0 %982
    %984 = vrot.lane.b32.xlu0 %v836, 90
    %v985 = vpop.permute.xlu0 %984
    %986 = vrot.lane.b32.xlu0 %v837, 90
    %v987 = vpop.permute.xlu0 %986
    %988 = vrot.lane.b32.xlu0 %v838, 90
    %v989 = vpop.permute.xlu0 %988
    %990 = vrot.lane.b32.xlu0 %v839, 90
    %v991 = vpop.permute.xlu0 %990
    %992 = vrot.lane.b32.xlu0 %v919, 90
    %v993 = vpop.permute.xlu0 %992
    %v994 = vsel %vm307, %v981, %v983
    %v995 = vsel %vm307, %v983, %v985
    %v996 = vsel %vm307, %v985, %v987
    %v997 = vsel %vm307, %v987, %v989
    %v998 = vsel %vm307, %v989, %v991
    %v999 = vsel %vm307, %v991, %v993
    %v1000 = vld [vmem:[%s6] sm:$0xff]
    %v1001 = vld [vmem:[%s6 + $0x8] sm:$0xff]
    %1003 = vrot.lane.b32.xlu0 0, 127
    %v1004 = vpop.permute.xlu0 %1003
    %1005 = vrot.lane.b32.xlu0 %v803, 127
    %v1006 = vpop.permute.xlu0 %1005
    %1007 = vrot.lane.b32.xlu0 %v804, 127
    %v1008 = vpop.permute.xlu0 %1007
    %1009 = vrot.lane.b32.xlu0 %v805, 127
    %v1010 = vpop.permute.xlu0 %1009
    %1011 = vrot.lane.b32.xlu0 %v806, 127
    %v1012 = vpop.permute.xlu0 %1011
    %1013 = vrot.lane.b32.xlu0 %v807, 127
    %v1014 = vpop.permute.xlu0 %1013
    %1015 = vrot.lane.b32.xlu0 %v808, 127
    %v1016 = vpop.permute.xlu0 %1015
    %v1017 = vsel %vm160, %v1004, %v1006
    %v1018 = vsel %vm160, %v1006, %v1008
    %v1019 = vsel %vm160, %v1008, %v1010
    %v1020 = vsel %vm160, %v1010, %v1012
    %v1021 = vsel %vm160, %v1012, %v1014
    %v1022 = vsel %vm160, %v1014, %v1016
    %1023 = vrot.lane.b32.xlu0 0, 126
    %v1024 = vpop.permute.xlu0 %1023
    %1025 = vrot.lane.b32.xlu0 %v803, 126
    %v1026 = vpop.permute.xlu0 %1025
    %1027 = vrot.lane.b32.xlu0 %v804, 126
    %v1028 = vpop.permute.xlu0 %1027
    %1029 = vrot.lane.b32.xlu0 %v805, 126
    %v1030 = vpop.permute.xlu0 %1029
    %1031 = vrot.lane.b32.xlu0 %v806, 126
    %v1032 = vpop.permute.xlu0 %1031
    %1033 = vrot.lane.b32.xlu0 %v807, 126
    %v1034 = vpop.permute.xlu0 %1033
    %1035 = vrot.lane.b32.xlu0 %v808, 126
    %v1036 = vpop.permute.xlu0 %1035
    %v1037 = vsel %vm181, %v1024, %v1026
    %v1038 = vsel %vm181, %v1026, %v1028
    %v1039 = vsel %vm181, %v1028, %v1030
    %v1040 = vsel %vm181, %v1030, %v1032
    %v1041 = vsel %vm181, %v1032, %v1034
    %v1042 = vsel %vm181, %v1034, %v1036
    %1043 = vrot.lane.b32.xlu0 0, 110
    %v1044 = vpop.permute.xlu0 %1043
    %1045 = vrot.lane.b32.xlu0 %v803, 110
    %v1046 = vpop.permute.xlu0 %1045
    %1047 = vrot.lane.b32.xlu0 %v804, 110
    %v1048 = vpop.permute.xlu0 %1047
    %1049 = vrot.lane.b32.xlu0 %v805, 110
    %v1050 = vpop.permute.xlu0 %1049
    %1051 = vrot.lane.b32.xlu0 %v806, 110
    %v1052 = vpop.permute.xlu0 %1051
    %1053 = vrot.lane.b32.xlu0 %v807, 110
    %v1054 = vpop.permute.xlu0 %1053
    %1055 = vrot.lane.b32.xlu0 %v808, 110
    %v1056 = vpop.permute.xlu0 %1055
    %v1057 = vsel %vm202, %v1044, %v1046
    %v1058 = vsel %vm202, %v1046, %v1048
    %v1059 = vsel %vm202, %v1048, %v1050
    %v1060 = vsel %vm202, %v1050, %v1052
    %v1061 = vsel %vm202, %v1052, %v1054
    %v1062 = vsel %vm202, %v1054, %v1056
    %1063 = vrot.lane.b32.xlu0 %v803, 109
    %v1064 = vpop.permute.xlu0 %1063
    %1065 = vrot.lane.b32.xlu0 %v804, 109
    %v1066 = vpop.permute.xlu0 %1065
    %1067 = vrot.lane.b32.xlu0 %v805, 109
    %v1068 = vpop.permute.xlu0 %1067
    %1069 = vrot.lane.b32.xlu0 %v806, 109
    %v1070 = vpop.permute.xlu0 %1069
    %1071 = vrot.lane.b32.xlu0 %v807, 109
    %v1072 = vpop.permute.xlu0 %1071
    %1073 = vrot.lane.b32.xlu0 %v808, 109
    %v1074 = vpop.permute.xlu0 %1073
    %v1075 = vsel %vm221, %v1064, %v1066
    %v1076 = vsel %vm221, %v1066, %v1068
    %v1077 = vsel %vm221, %v1068, %v1070
    %v1078 = vsel %vm221, %v1070, %v1072
    %v1079 = vsel %vm221, %v1072, %v1074
    %1080 = vrot.lane.b32.xlu0 %v803, 108
    %v1081 = vpop.permute.xlu0 %1080
    %1082 = vrot.lane.b32.xlu0 %v804, 108
    %v1083 = vpop.permute.xlu0 %1082
    %1084 = vrot.lane.b32.xlu0 %v805, 108
    %v1085 = vpop.permute.xlu0 %1084
    %1086 = vrot.lane.b32.xlu0 %v806, 108
    %v1087 = vpop.permute.xlu0 %1086
    %1088 = vrot.lane.b32.xlu0 %v807, 108
    %v1089 = vpop.permute.xlu0 %1088
    %1090 = vrot.lane.b32.xlu0 %v808, 108
    %v1091 = vpop.permute.xlu0 %1090
    %1092 = vrot.lane.b32.xlu0 0, 108
    %v1093 = vpop.permute.xlu0 %1092
    %v1094 = vsel %vm244, %v1081, %v1083
    %v1095 = vsel %vm244, %v1083, %v1085
    %v1096 = vsel %vm244, %v1085, %v1087
    %v1097 = vsel %vm244, %v1087, %v1089
    %v1098 = vsel %vm244, %v1089, %v1091
    %v1099 = vsel %vm244, %v1091, %v1093
    %1100 = vrot.lane.b32.xlu0 %v803, 92
    %v1101 = vpop.permute.xlu0 %1100
    %1102 = vrot.lane.b32.xlu0 %v804, 92
    %v1103 = vpop.permute.xlu0 %1102
    %1104 = vrot.lane.b32.xlu0 %v805, 92
    %v1105 = vpop.permute.xlu0 %1104
    %1106 = vrot.lane.b32.xlu0 %v806, 92
    %v1107 = vpop.permute.xlu0 %1106
    %1108 = vrot.lane.b32.xlu0 %v807, 92
    %v1109 = vpop.permute.xlu0 %1108
    %1110 = vrot.lane.b32.xlu0 %v808, 92
    %v1111 = vpop.permute.xlu0 %1110
    %1112 = vrot.lane.b32.xlu0 0, 92
    %v1113 = vpop.permute.xlu0 %1112
    %v1114 = vsel %vm265, %v1101, %v1103
    %v1115 = vsel %vm265, %v1103, %v1105
    %v1116 = vsel %vm265, %v1105, %v1107
    %v1117 = vsel %vm265, %v1107, %v1109
    %v1118 = vsel %vm265, %v1109, %v1111
    %v1119 = vsel %vm265, %v1111, %v1113
    %1120 = vrot.lane.b32.xlu0 %v803, 91
    %v1121 = vpop.permute.xlu0 %1120
    %1122 = vrot.lane.b32.xlu0 %v804, 91
    %v1123 = vpop.permute.xlu0 %1122
    %1124 = vrot.lane.b32.xlu0 %v805, 91
    %v1125 = vpop.permute.xlu0 %1124
    %1126 = vrot.lane.b32.xlu0 %v806, 91
    %v1127 = vpop.permute.xlu0 %1126
    %1128 = vrot.lane.b32.xlu0 %v807, 91
    %v1129 = vpop.permute.xlu0 %1128
    %1130 = vrot.lane.b32.xlu0 %v808, 91
    %v1131 = vpop.permute.xlu0 %1130
    %1132 = vrot.lane.b32.xlu0 0, 91
    %v1133 = vpop.permute.xlu0 %1132
    %v1134 = vsel %vm286, %v1121, %v1123
    %v1135 = vsel %vm286, %v1123, %v1125
    %v1136 = vsel %vm286, %v1125, %v1127
    %v1137 = vsel %vm286, %v1127, %v1129
    %v1138 = vsel %vm286, %v1129, %v1131
    %v1139 = vsel %vm286, %v1131, %v1133
    %1140 = vrot.lane.b32.xlu0 %v803, 90
    %v1141 = vpop.permute.xlu0 %1140
    %1142 = vrot.lane.b32.xlu0 %v804, 90
    %v1143 = vpop.permute.xlu0 %1142
    %1144 = vrot.lane.b32.xlu0 %v805, 90
    %v1145 = vpop.permute.xlu0 %1144
    %1146 = vrot.lane.b32.xlu0 %v806, 90
    %v1147 = vpop.permute.xlu0 %1146
    %1148 = vrot.lane.b32.xlu0 %v807, 90
    %v1149 = vpop.permute.xlu0 %1148
    %1150 = vrot.lane.b32.xlu0 %v808, 90
    %v1151 = vpop.permute.xlu0 %1150
    %1152 = vrot.lane.b32.xlu0 0, 90
    %v1153 = vpop.permute.xlu0 %1152
    %v1154 = vsel %vm307, %v1141, %v1143
    %v1155 = vsel %vm307, %v1143, %v1145
    %v1156 = vsel %vm307, %v1145, %v1147
    %v1157 = vsel %vm307, %v1147, %v1149
    %v1158 = vsel %vm307, %v1149, %v1151
    %v1159 = vsel %vm307, %v1151, %v1153
    %v1162 = vunpack.c.l.b16 %v1000
    %v1163 = vunpack.c.h.b16 %v1000
    %v1164 = vunpack.c.l.b16 %v1001
    %v1165 = vunpack.c.h.b16 %v1001
    %v1166 = vpack.c.b16 %v1164, %v1162
    %v1167 = vpack.c.b16 %v1165, %v1163
    %1169 = vrot.lane.b32.xlu0 0, 19
    %v1170 = vpop.permute.xlu0 %1169
    %1171 = vrot.lane.b32.xlu0 %v803, 19
    %v1172 = vpop.permute.xlu0 %1171
    %1173 = vrot.lane.b32.xlu0 %v804, 19
    %v1174 = vpop.permute.xlu0 %1173
    %1175 = vrot.lane.b32.xlu0 %v805, 19
    %v1176 = vpop.permute.xlu0 %1175
    %1177 = vrot.lane.b32.xlu0 %v806, 19
    %v1178 = vpop.permute.xlu0 %1177
    %1179 = vrot.lane.b32.xlu0 %v807, 19
    %v1180 = vpop.permute.xlu0 %1179
    %1181 = vrot.lane.b32.xlu0 %v808, 19
    %v1182 = vpop.permute.xlu0 %1181
    %1183 = vrot.lane.b32.xlu0 %v1017, 19
    %v1184 = vpop.permute.xlu0 %1183
    %1185 = vrot.lane.b32.xlu0 %v1018, 19
    %v1186 = vpop.permute.xlu0 %1185
    %1187 = vrot.lane.b32.xlu0 %v1019, 19
    %v1188 = vpop.permute.xlu0 %1187
    %1189 = vrot.lane.b32.xlu0 %v1020, 19
    %v1190 = vpop.permute.xlu0 %1189
    %1191 = vrot.lane.b32.xlu0 %v1021, 19
    %v1192 = vpop.permute.xlu0 %1191
    %1193 = vrot.lane.b32.xlu0 %v1022, 19
    %v1194 = vpop.permute.xlu0 %1193
    %1195 = vrot.lane.b32.xlu0 %v1016, 19
    %v1196 = vpop.permute.xlu0 %1195
    %1197 = vrot.lane.b32.xlu0 %v1037, 19
    %v1198 = vpop.permute.xlu0 %1197
    %1199 = vrot.lane.b32.xlu0 %v1038, 19
    %v1200 = vpop.permute.xlu0 %1199
    %1201 = vrot.lane.b32.xlu0 %v1039, 19
    %v1202 = vpop.permute.xlu0 %1201
    %1203 = vrot.lane.b32.xlu0 %v1040, 19
    %v1204 = vpop.permute.xlu0 %1203
    %1205 = vrot.lane.b32.xlu0 %v1041, 19
    %v1206 = vpop.permute.xlu0 %1205
    %1207 = vrot.lane.b32.xlu0 %v1042, 19
    %v1208 = vpop.permute.xlu0 %1207
    %1209 = vrot.lane.b32.xlu0 %v1036, 19
    %v1210 = vpop.permute.xlu0 %1209
    %1211 = vrot.lane.b32.xlu0 %v1057, 19
    %v1212 = vpop.permute.xlu0 %1211
    %1213 = vrot.lane.b32.xlu0 %v1058, 19
    %v1214 = vpop.permute.xlu0 %1213
    %1215 = vrot.lane.b32.xlu0 %v1059, 19
    %v1216 = vpop.permute.xlu0 %1215
    %1217 = vrot.lane.b32.xlu0 %v1060, 19
    %v1218 = vpop.permute.xlu0 %1217
    %1219 = vrot.lane.b32.xlu0 %v1061, 19
    %v1220 = vpop.permute.xlu0 %1219
    %1221 = vrot.lane.b32.xlu0 %v1062, 19
    %v1222 = vpop.permute.xlu0 %1221
    %1223 = vrot.lane.b32.xlu0 %v1056, 19
    %v1224 = vpop.permute.xlu0 %1223
    %1225 = vrot.lane.b32.xlu0 %v1064, 19
    %v1226 = vpop.permute.xlu0 %1225
    %1227 = vrot.lane.b32.xlu0 %v1075, 19
    %v1228 = vpop.permute.xlu0 %1227
    %1229 = vrot.lane.b32.xlu0 %v1076, 19
    %v1230 = vpop.permute.xlu0 %1229
    %1231 = vrot.lane.b32.xlu0 %v1077, 19
    %v1232 = vpop.permute.xlu0 %1231
    %1233 = vrot.lane.b32.xlu0 %v1078, 19
    %v1234 = vpop.permute.xlu0 %1233
    %1235 = vrot.lane.b32.xlu0 %v1079, 19
    %v1236 = vpop.permute.xlu0 %1235
    %1237 = vrot.lane.b32.xlu0 %v1074, 19
    %v1238 = vpop.permute.xlu0 %1237
    %1239 = vrot.lane.b32.xlu0 %v1081, 19
    %v1240 = vpop.permute.xlu0 %1239
    %1241 = vrot.lane.b32.xlu0 %v1094, 19
    %v1242 = vpop.permute.xlu0 %1241
    %1243 = vrot.lane.b32.xlu0 %v1095, 19
    %v1244 = vpop.permute.xlu0 %1243
    %1245 = vrot.lane.b32.xlu0 %v1096, 19
    %v1246 = vpop.permute.xlu0 %1245
    %1247 = vrot.lane.b32.xlu0 %v1097, 19
    %v1248 = vpop.permute.xlu0 %1247
    %1249 = vrot.lane.b32.xlu0 %v1098, 19
    %v1250 = vpop.permute.xlu0 %1249
    %1251 = vrot.lane.b32.xlu0 %v1099, 19
    %v1252 = vpop.permute.xlu0 %1251
    %1253 = vrot.lane.b32.xlu0 %v1101, 19
    %v1254 = vpop.permute.xlu0 %1253
    %1255 = vrot.lane.b32.xlu0 %v1114, 19
    %v1256 = vpop.permute.xlu0 %1255
    %1257 = vrot.lane.b32.xlu0 %v1115, 19
    %v1258 = vpop.permute.xlu0 %1257
    %1259 = vrot.lane.b32.xlu0 %v1116, 19
    %v1260 = vpop.permute.xlu0 %1259
    %1261 = vrot.lane.b32.xlu0 %v1117, 19
    %v1262 = vpop.permute.xlu0 %1261
    %1263 = vrot.lane.b32.xlu0 %v1118, 19
    %v1264 = vpop.permute.xlu0 %1263
    %1265 = vrot.lane.b32.xlu0 %v1119, 19
    %v1266 = vpop.permute.xlu0 %1265
    %1267 = vrot.lane.b32.xlu0 %v1121, 19
    %v1268 = vpop.permute.xlu0 %1267
    %1269 = vrot.lane.b32.xlu0 %v1134, 19
    %v1270 = vpop.permute.xlu0 %1269
    %1271 = vrot.lane.b32.xlu0 %v1135, 19
    %v1272 = vpop.permute.xlu0 %1271
    %1273 = vrot.lane.b32.xlu0 %v1136, 19
    %v1274 = vpop.permute.xlu0 %1273
    %1275 = vrot.lane.b32.xlu0 %v1137, 19
    %v1276 = vpop.permute.xlu0 %1275
    %1277 = vrot.lane.b32.xlu0 %v1138, 19
    %v1278 = vpop.permute.xlu0 %1277
    %1279 = vrot.lane.b32.xlu0 %v1139, 19
    %v1280 = vpop.permute.xlu0 %1279
    %1281 = vrot.lane.b32.xlu0 %v1141, 19
    %v1282 = vpop.permute.xlu0 %1281
    %1283 = vrot.lane.b32.xlu0 %v1154, 19
    %v1284 = vpop.permute.xlu0 %1283
    %1285 = vrot.lane.b32.xlu0 %v1155, 19
    %v1286 = vpop.permute.xlu0 %1285
    %1287 = vrot.lane.b32.xlu0 %v1156, 19
    %v1288 = vpop.permute.xlu0 %1287
    %1289 = vrot.lane.b32.xlu0 %v1157, 19
    %v1290 = vpop.permute.xlu0 %1289
    %1291 = vrot.lane.b32.xlu0 %v1158, 19
    %v1292 = vpop.permute.xlu0 %1291
    %1293 = vrot.lane.b32.xlu0 %v1159, 19
    %v1294 = vpop.permute.xlu0 %1293
    %v1295 = vsel %vm461, %v1170, %v1172
    %v1296 = vsel %vm461, %v1172, %v1174
    %v1297 = vsel %vm461, %v1174, %v1176
    %v1298 = vsel %vm461, %v1176, %v1178
    %v1299 = vsel %vm461, %v1178, %v1180
    %v1300 = vsel %vm461, %v1180, %v1182
    %v1301 = vsel %vm461, %v1184, %v1186
    %v1302 = vsel %vm461, %v1186, %v1188
    %v1303 = vsel %vm461, %v1188, %v1190
    %v1304 = vsel %vm461, %v1190, %v1192
    %v1305 = vsel %vm461, %v1192, %v1194
    %v1306 = vsel %vm461, %v1194, %v1196
    %v1307 = vsel %vm461, %v1198, %v1200
    %v1308 = vsel %vm461, %v1200, %v1202
    %v1309 = vsel %vm461, %v1202, %v1204
    %v1310 = vsel %vm461, %v1204, %v1206
    %v1311 = vsel %vm461, %v1206, %v1208
    %v1312 = vsel %vm461, %v1208, %v1210
    %v1313 = vsel %vm461, %v1212, %v1214
    %v1314 = vsel %vm461, %v1214, %v1216
    %v1315 = vsel %vm461, %v1216, %v1218
    %v1316 = vsel %vm461, %v1218, %v1220
    %v1317 = vsel %vm461, %v1220, %v1222
    %v1318 = vsel %vm461, %v1222, %v1224
    %v1319 = vsel %vm461, %v1226, %v1228
    %v1320 = vsel %vm461, %v1228, %v1230
    %v1321 = vsel %vm461, %v1230, %v1232
    %v1322 = vsel %vm461, %v1232, %v1234
    %v1323 = vsel %vm461, %v1234, %v1236
    %v1324 = vsel %vm461, %v1236, %v1238
    %v1325 = vsel %vm461, %v1240, %v1242
    %v1326 = vsel %vm461, %v1242, %v1244
    %v1327 = vsel %vm461, %v1244, %v1246
    %v1328 = vsel %vm461, %v1246, %v1248
    %v1329 = vsel %vm461, %v1248, %v1250
    %v1330 = vsel %vm461, %v1250, %v1252
    %v1331 = vsel %vm461, %v1254, %v1256
    %v1332 = vsel %vm461, %v1256, %v1258
    %v1333 = vsel %vm461, %v1258, %v1260
    %v1334 = vsel %vm461, %v1260, %v1262
    %v1335 = vsel %vm461, %v1262, %v1264
    %v1336 = vsel %vm461, %v1264, %v1266
    %v1337 = vsel %vm461, %v1268, %v1270
    %v1338 = vsel %vm461, %v1270, %v1272
    %v1339 = vsel %vm461, %v1272, %v1274
    %v1340 = vsel %vm461, %v1274, %v1276
    %v1341 = vsel %vm461, %v1276, %v1278
    %v1342 = vsel %vm461, %v1278, %v1280
    %v1343 = vsel %vm461, %v1282, %v1284
    %v1344 = vsel %vm461, %v1284, %v1286
    %v1345 = vsel %vm461, %v1286, %v1288
    %v1346 = vsel %vm461, %v1288, %v1290
    %v1347 = vsel %vm461, %v1290, %v1292
    %v1348 = vsel %vm461, %v1292, %v1294
    %v1404 = vsel %vm570, %v1167, 0
    %1406 = vmatpush.bf16.msra.mxu0 %v1337
    %1407 = vmatpush.bf16.msra.mxu0 %v1331
    %1408 = vmatpush.bf16.msra.mxu0 %v1325
    %1409 = vmatpush.bf16.msra.mxu0 %v1319
    %1410 = vmatpush.bf16.msra.mxu0 %v1313
    %1411 = vmatpush.bf16.msra.mxu0 %v1307
    %1412 = vmatpush.bf16.msra.mxu0 %v1301
    %1413 = vmatpush.bf16.msra.mxu0 %v1295
    %1414 = vmatmul.bf16.gmra.mxu0 %v1166
    %v1415 = vpop.f32.mrf.mxu0
    %v1416 = vadd.f32 0.0, %v1415
    %v1417 = vpop.f32.mrf.mxu0
    %v1418 = vadd.f32 0.0, %v1417
    %1419 = vdwg.mxu0
    %1420 = vmatpush.bf16.msra.mxu0 0
    %1421 = vmatpush.bf16.msra.mxu0 0
    %1422 = vmatpush.bf16.msra.mxu0 0
    %1423 = vmatpush.bf16.msra.mxu0 0
    %1424 = vmatpush.bf16.msra.mxu0 0
    %1425 = vmatpush.bf16.msra.mxu0 0
    %1426 = vmatpush.bf16.msra.mxu0 0
    %1427 = vmatpush.bf16.msra.mxu0 %v1343
    %1428 = vmatmul.bf16.gmra.mxu0 %v1404
    %v1429 = vpop.f32.mrf.mxu0
    %v1430 = vadd.f32 %v1416, %v1429
    %v1431 = vpop.f32.mrf.mxu0
    %v1432 = vadd.f32 %v1418, %v1431
    %1433 = vdwg.mxu0
    %1434 = vmatpush.bf16.msra.mxu0 %v1338
    %1435 = vmatpush.bf16.msra.mxu0 %v1332
    %1436 = vmatpush.bf16.msra.mxu0 %v1326
    %1437 = vmatpush.bf16.msra.mxu0 %v1320
    %1438 = vmatpush.bf16.msra.mxu0 %v1314
    %1439 = vmatpush.bf16.msra.mxu0 %v1308
    %1440 = vmatpush.bf16.msra.mxu0 %v1302
    %1441 = vmatpush.bf16.msra.mxu0 %v1296
    %1442 = vmatmul.bf16.gmra.mxu0 %v1166
    %v1443 = vpop.f32.mrf.mxu0
    %v1444 = vadd.f32 0.0, %v1443
    %v1445 = vpop.f32.mrf.mxu0
    %v1446 = vadd.f32 0.0, %v1445
    %1447 = vdwg.mxu0
    %1448 = vmatpush.bf16.msra.mxu0 0
    %1449 = vmatpush.bf16.msra.mxu0 0
    %1450 = vmatpush.bf16.msra.mxu0 0
    %1451 = vmatpush.bf16.msra.mxu0 0
    %1452 = vmatpush.bf16.msra.mxu0 0
    %1453 = vmatpush.bf16.msra.mxu0 0
    %1454 = vmatpush.bf16.msra.mxu0 0
    %1455 = vmatpush.bf16.msra.mxu0 %v1344
    %1456 = vmatmul.bf16.gmra.mxu0 %v1404
    %v1457 = vpop.f32.mrf.mxu0
    %v1458 = vadd.f32 %v1444, %v1457
    %v1459 = vpop.f32.mrf.mxu0
    %v1460 = vadd.f32 %v1446, %v1459
    %1461 = vdwg.mxu0
    %1462 = vmatpush.bf16.msra.mxu0 %v1339
    %1463 = vmatpush.bf16.msra.mxu0 %v1333
    %1464 = vmatpush.bf16.msra.mxu0 %v1327
    %1465 = vmatpush.bf16.msra.mxu0 %v1321
    %1466 = vmatpush.bf16.msra.mxu0 %v1315
    %1467 = vmatpush.bf16.msra.mxu0 %v1309
    %1468 = vmatpush.bf16.msra.mxu0 %v1303
    %1469 = vmatpush.bf16.msra.mxu0 %v1297
    %1470 = vmatmul.bf16.gmra.mxu0 %v1166
    %v1471 = vpop.f32.mrf.mxu0
    %v1472 = vadd.f32 0.0, %v1471
    %v1473 = vpop.f32.mrf.mxu0
    %v1474 = vadd.f32 0.0, %v1473
    %1475 = vdwg.mxu0
    %1476 = vmatpush.bf16.msra.mxu0 0
    %1477 = vmatpush.bf16.msra.mxu0 0
    %1478 = vmatpush.bf16.msra.mxu0 0
    %1479 = vmatpush.bf16.msra.mxu0 0
    %1480 = vmatpush.bf16.msra.mxu0 0
    %1481 = vmatpush.bf16.msra.mxu0 0
    %1482 = vmatpush.bf16.msra.mxu0 0
    %1483 = vmatpush.bf16.msra.mxu0 %v1345
    %1484 = vmatmul.bf16.gmra.mxu0 %v1404
    %v1485 = vpop.f32.mrf.mxu0
    %v1486 = vadd.f32 %v1472, %v1485
    %v1487 = vpop.f32.mrf.mxu0
    %v1488 = vadd.f32 %v1474, %v1487
    %1489 = vdwg.mxu0
    %1490 = vmatpush.bf16.msra.mxu0 %v1340
    %1491 = vmatpush.bf16.msra.mxu0 %v1334
    %1492 = vmatpush.bf16.msra.mxu0 %v1328
    %1493 = vmatpush.bf16.msra.mxu0 %v1322
    %1494 = vmatpush.bf16.msra.mxu0 %v1316
    %1495 = vmatpush.bf16.msra.mxu0 %v1310
    %1496 = vmatpush.bf16.msra.mxu0 %v1304
    %1497 = vmatpush.bf16.msra.mxu0 %v1298
    %1498 = vmatmul.bf16.gmra.mxu0 %v1166
    %v1499 = vpop.f32.mrf.mxu0
    %v1500 = vadd.f32 0.0, %v1499
    %v1501 = vpop.f32.mrf.mxu0
    %v1502 = vadd.f32 0.0, %v1501
    %1503 = vdwg.mxu0
    %1504 = vmatpush.bf16.msra.mxu0 0
    %1505 = vmatpush.bf16.msra.mxu0 0
    %1506 = vmatpush.bf16.msra.mxu0 0
    %1507 = vmatpush.bf16.msra.mxu0 0
    %1508 = vmatpush.bf16.msra.mxu0 0
    %1509 = vmatpush.bf16.msra.mxu0 0
    %1510 = vmatpush.bf16.msra.mxu0 0
    %1511 = vmatpush.bf16.msra.mxu0 %v1346
    %1512 = vmatmul.bf16.gmra.mxu0 %v1404
    %v1513 = vpop.f32.mrf.mxu0
    %v1514 = vadd.f32 %v1500, %v1513
    %v1515 = vpop.f32.mrf.mxu0
    %v1516 = vadd.f32 %v1502, %v1515
    %1517 = vdwg.mxu0
    %1518 = vmatpush.bf16.msra.mxu0 %v1341
    %1519 = vmatpush.bf16.msra.mxu0 %v1335
    %1520 = vmatpush.bf16.msra.mxu0 %v1329
    %1521 = vmatpush.bf16.msra.mxu0 %v1323
    %1522 = vmatpush.bf16.msra.mxu0 %v1317
    %1523 = vmatpush.bf16.msra.mxu0 %v1311
    %1524 = vmatpush.bf16.msra.mxu0 %v1305
    %1525 = vmatpush.bf16.msra.mxu0 %v1299
    %1526 = vmatmul.bf16.gmra.mxu0 %v1166
    %v1527 = vpop.f32.mrf.mxu0
    %v1528 = vadd.f32 0.0, %v1527
    %v1529 = vpop.f32.mrf.mxu0
    %v1530 = vadd.f32 0.0, %v1529
    %1531 = vdwg.mxu0
    %1532 = vmatpush.bf16.msra.mxu0 0
    %1533 = vmatpush.bf16.msra.mxu0 0
    %1534 = vmatpush.bf16.msra.mxu0 0
    %1535 = vmatpush.bf16.msra.mxu0 0
    %1536 = vmatpush.bf16.msra.mxu0 0
    %1537 = vmatpush.bf16.msra.mxu0 0
    %1538 = vmatpush.bf16.msra.mxu0 0
    %1539 = vmatpush.bf16.msra.mxu0 %v1347
    %1540 = vmatmul.bf16.gmra.mxu0 %v1404
    %v1541 = vpop.f32.mrf.mxu0
    %v1542 = vadd.f32 %v1528, %v1541
    %v1543 = vpop.f32.mrf.mxu0
    %v1544 = vadd.f32 %v1530, %v1543
    %1545 = vdwg.mxu0
    %1546 = vmatpush.bf16.msra.mxu0 %v1342
    %1547 = vmatpush.bf16.msra.mxu0 %v1336
    %1548 = vmatpush.bf16.msra.mxu0 %v1330
    %1549 = vmatpush.bf16.msra.mxu0 %v1324
    %1550 = vmatpush.bf16.msra.mxu0 %v1318
    %1551 = vmatpush.bf16.msra.mxu0 %v1312
    %1552 = vmatpush.bf16.msra.mxu0 %v1306
    %1553 = vmatpush.bf16.msra.mxu0 %v1300
    %1554 = vmatmul.bf16.gmra.mxu0 %v1166
    %v1555 = vpop.f32.mrf.mxu0
    %v1556 = vadd.f32 0.0, %v1555
    %v1557 = vpop.f32.mrf.mxu0
    %v1558 = vadd.f32 0.0, %v1557
    %1559 = vdwg.mxu0
    %1560 = vmatpush.bf16.msra.mxu0 0
    %1561 = vmatpush.bf16.msra.mxu0 0
    %1562 = vmatpush.bf16.msra.mxu0 0
    %1563 = vmatpush.bf16.msra.mxu0 0
    %1564 = vmatpush.bf16.msra.mxu0 0
    %1565 = vmatpush.bf16.msra.mxu0 0
    %1566 = vmatpush.bf16.msra.mxu0 0
    %1567 = vmatpush.bf16.msra.mxu0 %v1348
    %1568 = vmatmul.bf16.gmra.mxu0 %v1404
    %v1569 = vpop.f32.mrf.mxu0
    %v1570 = vadd.f32 %v1556, %v1569
    %v1571 = vpop.f32.mrf.mxu0
    %v1572 = vadd.f32 %v1558, %v1571
    %1573 = vdwg.mxu0
    %v1576 = vunpack.c.l.b16 %v809
    %v1577 = vunpack.c.h.b16 %v809
    %v1578 = vunpack.c.l.b16 %v810
    %v1579 = vunpack.c.h.b16 %v810
    %v1580 = vpack.c.b16 %v1578, %v1576
    %v1581 = vpack.c.b16 %v1579, %v1577
    %1583 = vrot.lane.b32.xlu0 %v833, 19
    %v1584 = vpop.permute.xlu0 %1583
    %1585 = vrot.lane.b32.xlu0 %v834, 19
    %v1586 = vpop.permute.xlu0 %1585
    %1587 = vrot.lane.b32.xlu0 %v835, 19
    %v1588 = vpop.permute.xlu0 %1587
    %1589 = vrot.lane.b32.xlu0 %v836, 19
    %v1590 = vpop.permute.xlu0 %1589
    %1591 = vrot.lane.b32.xlu0 %v837, 19
    %v1592 = vpop.permute.xlu0 %1591
    %1593 = vrot.lane.b32.xlu0 %v838, 19
    %v1594 = vpop.permute.xlu0 %1593
    %1595 = vrot.lane.b32.xlu0 %v839, 19
    %v1596 = vpop.permute.xlu0 %1595
    %1597 = vrot.lane.b32.xlu0 %v854, 19
    %v1598 = vpop.permute.xlu0 %1597
    %1599 = vrot.lane.b32.xlu0 %v855, 19
    %v1600 = vpop.permute.xlu0 %1599
    %1601 = vrot.lane.b32.xlu0 %v856, 19
    %v1602 = vpop.permute.xlu0 %1601
    %1603 = vrot.lane.b32.xlu0 %v857, 19
    %v1604 = vpop.permute.xlu0 %1603
    %1605 = vrot.lane.b32.xlu0 %v858, 19
    %v1606 = vpop.permute.xlu0 %1605
    %1607 = vrot.lane.b32.xlu0 %v859, 19
    %v1608 = vpop.permute.xlu0 %1607
    %1609 = vrot.lane.b32.xlu0 %v853, 19
    %v1610 = vpop.permute.xlu0 %1609
    %1611 = vrot.lane.b32.xlu0 %v874, 19
    %v1612 = vpop.permute.xlu0 %1611
    %1613 = vrot.lane.b32.xlu0 %v875, 19
    %v1614 = vpop.permute.xlu0 %1613
    %1615 = vrot.lane.b32.xlu0 %v876, 19
    %v1616 = vpop.permute.xlu0 %1615
    %1617 = vrot.lane.b32.xlu0 %v877, 19
    %v1618 = vpop.permute.xlu0 %1617
    %1619 = vrot.lane.b32.xlu0 %v878, 19
    %v1620 = vpop.permute.xlu0 %1619
    %1621 = vrot.lane.b32.xlu0 %v879, 19
    %v1622 = vpop.permute.xlu0 %1621
    %1623 = vrot.lane.b32.xlu0 %v873, 19
    %v1624 = vpop.permute.xlu0 %1623
    %1625 = vrot.lane.b32.xlu0 %v894, 19
    %v1626 = vpop.permute.xlu0 %1625
    %1627 = vrot.lane.b32.xlu0 %v895, 19
    %v1628 = vpop.permute.xlu0 %1627
    %1629 = vrot.lane.b32.xlu0 %v896, 19
    %v1630 = vpop.permute.xlu0 %1629
    %1631 = vrot.lane.b32.xlu0 %v897, 19
    %v1632 = vpop.permute.xlu0 %1631
    %1633 = vrot.lane.b32.xlu0 %v898, 19
    %v1634 = vpop.permute.xlu0 %1633
    %1635 = vrot.lane.b32.xlu0 %v899, 19
    %v1636 = vpop.permute.xlu0 %1635
    %1637 = vrot.lane.b32.xlu0 %v893, 19
    %v1638 = vpop.permute.xlu0 %1637
    %1639 = vrot.lane.b32.xlu0 %v901, 19
    %v1640 = vpop.permute.xlu0 %1639
    %1641 = vrot.lane.b32.xlu0 %v912, 19
    %v1642 = vpop.permute.xlu0 %1641
    %1643 = vrot.lane.b32.xlu0 %v913, 19
    %v1644 = vpop.permute.xlu0 %1643
    %1645 = vrot.lane.b32.xlu0 %v914, 19
    %v1646 = vpop.permute.xlu0 %1645
    %1647 = vrot.lane.b32.xlu0 %v915, 19
    %v1648 = vpop.permute.xlu0 %1647
    %1649 = vrot.lane.b32.xlu0 %v916, 19
    %v1650 = vpop.permute.xlu0 %1649
    %1651 = vrot.lane.b32.xlu0 %v911, 19
    %v1652 = vpop.permute.xlu0 %1651
    %1653 = vrot.lane.b32.xlu0 %v921, 19
    %v1654 = vpop.permute.xlu0 %1653
    %1655 = vrot.lane.b32.xlu0 %v934, 19
    %v1656 = vpop.permute.xlu0 %1655
    %1657 = vrot.lane.b32.xlu0 %v935, 19
    %v1658 = vpop.permute.xlu0 %1657
    %1659 = vrot.lane.b32.xlu0 %v936, 19
    %v1660 = vpop.permute.xlu0 %1659
    %1661 = vrot.lane.b32.xlu0 %v937, 19
    %v1662 = vpop.permute.xlu0 %1661
    %1663 = vrot.lane.b32.xlu0 %v938, 19
    %v1664 = vpop.permute.xlu0 %1663
    %1665 = vrot.lane.b32.xlu0 %v939, 19
    %v1666 = vpop.permute.xlu0 %1665
    %1667 = vrot.lane.b32.xlu0 %v941, 19
    %v1668 = vpop.permute.xlu0 %1667
    %1669 = vrot.lane.b32.xlu0 %v954, 19
    %v1670 = vpop.permute.xlu0 %1669
    %1671 = vrot.lane.b32.xlu0 %v955, 19
    %v1672 = vpop.permute.xlu0 %1671
    %1673 = vrot.lane.b32.xlu0 %v956, 19
    %v1674 = vpop.permute.xlu0 %1673
    %1675 = vrot.lane.b32.xlu0 %v957, 19
    %v1676 = vpop.permute.xlu0 %1675
    %1677 = vrot.lane.b32.xlu0 %v958, 19
    %v1678 = vpop.permute.xlu0 %1677
    %1679 = vrot.lane.b32.xlu0 %v959, 19
    %v1680 = vpop.permute.xlu0 %1679
    %1681 = vrot.lane.b32.xlu0 %v961, 19
    %v1682 = vpop.permute.xlu0 %1681
    %1683 = vrot.lane.b32.xlu0 %v974, 19
    %v1684 = vpop.permute.xlu0 %1683
    %1685 = vrot.lane.b32.xlu0 %v975, 19
    %v1686 = vpop.permute.xlu0 %1685
    %1687 = vrot.lane.b32.xlu0 %v976, 19
    %v1688 = vpop.permute.xlu0 %1687
    %1689 = vrot.lane.b32.xlu0 %v977, 19
    %v1690 = vpop.permute.xlu0 %1689
    %1691 = vrot.lane.b32.xlu0 %v978, 19
    %v1692 = vpop.permute.xlu0 %1691
    %1693 = vrot.lane.b32.xlu0 %v979, 19
    %v1694 = vpop.permute.xlu0 %1693
    %1695 = vrot.lane.b32.xlu0 %v981, 19
    %v1696 = vpop.permute.xlu0 %1695
    %1697 = vrot.lane.b32.xlu0 %v994, 19
    %v1698 = vpop.permute.xlu0 %1697
    %1699 = vrot.lane.b32.xlu0 %v995, 19
    %v1700 = vpop.permute.xlu0 %1699
    %1701 = vrot.lane.b32.xlu0 %v996, 19
    %v1702 = vpop.permute.xlu0 %1701
    %1703 = vrot.lane.b32.xlu0 %v997, 19
    %v1704 = vpop.permute.xlu0 %1703
    %1705 = vrot.lane.b32.xlu0 %v998, 19
    %v1706 = vpop.permute.xlu0 %1705
    %1707 = vrot.lane.b32.xlu0 %v999, 19
    %v1708 = vpop.permute.xlu0 %1707
    %v1709 = vsel %vm461, %v1584, %v1586
    %v1710 = vsel %vm461, %v1586, %v1588
    %v1711 = vsel %vm461, %v1588, %v1590
    %v1712 = vsel %vm461, %v1590, %v1592
    %v1713 = vsel %vm461, %v1592, %v1594
    %v1714 = vsel %vm461, %v1594, %v1596
    %v1715 = vsel %vm461, %v1598, %v1600
    %v1716 = vsel %vm461, %v1600, %v1602
    %v1717 = vsel %vm461, %v1602, %v1604
    %v1718 = vsel %vm461, %v1604, %v1606
    %v1719 = vsel %vm461, %v1606, %v1608
    %v1720 = vsel %vm461, %v1608, %v1610
    %v1721 = vsel %vm461, %v1612, %v1614
    %v1722 = vsel %vm461, %v1614, %v1616
    %v1723 = vsel %vm461, %v1616, %v1618
    %v1724 = vsel %vm461, %v1618, %v1620
    %v1725 = vsel %vm461, %v1620, %v1622
    %v1726 = vsel %vm461, %v1622, %v1624
    %v1727 = vsel %vm461, %v1626, %v1628
    %v1728 = vsel %vm461, %v1628, %v1630
    %v1729 = vsel %vm461, %v1630, %v1632
    %v1730 = vsel %vm461, %v1632, %v1634
    %v1731 = vsel %vm461, %v1634, %v1636
    %v1732 = vsel %vm461, %v1636, %v1638
    %v1733 = vsel %vm461, %v1640, %v1642
    %v1734 = vsel %vm461, %v1642, %v1644
    %v1735 = vsel %vm461, %v1644, %v1646
    %v1736 = vsel %vm461, %v1646, %v1648
    %v1737 = vsel %vm461, %v1648, %v1650
    %v1738 = vsel %vm461, %v1650, %v1652
    %v1739 = vsel %vm461, %v1654, %v1656
    %v1740 = vsel %vm461, %v1656, %v1658
    %v1741 = vsel %vm461, %v1658, %v1660
    %v1742 = vsel %vm461, %v1660, %v1662
    %v1743 = vsel %vm461, %v1662, %v1664
    %v1744 = vsel %vm461, %v1664, %v1666
    %v1745 = vsel %vm461, %v1668, %v1670
    %v1746 = vsel %vm461, %v1670, %v1672
    %v1747 = vsel %vm461, %v1672, %v1674
    %v1748 = vsel %vm461, %v1674, %v1676
    %v1749 = vsel %vm461, %v1676, %v1678
    %v1750 = vsel %vm461, %v1678, %v1680
    %v1751 = vsel %vm461, %v1682, %v1684
    %v1752 = vsel %vm461, %v1684, %v1686
    %v1753 = vsel %vm461, %v1686, %v1688
    %v1754 = vsel %vm461, %v1688, %v1690
    %v1755 = vsel %vm461, %v1690, %v1692
    %v1756 = vsel %vm461, %v1692, %v1694
    %v1757 = vsel %vm461, %v1696, %v1698
    %v1758 = vsel %vm461, %v1698, %v1700
    %v1759 = vsel %vm461, %v1700, %v1702
    %v1760 = vsel %vm461, %v1702, %v1704
    %v1761 = vsel %vm461, %v1704, %v1706
    %v1762 = vsel %vm461, %v1706, %v1708
    %v1818 = vsel %vm570, %v1581, 0
    %1820 = vmatpush.bf16.msra.mxu0 %v1751
    %1821 = vmatpush.bf16.msra.mxu0 %v1745
    %1822 = vmatpush.bf16.msra.mxu0 %v1739
    %1823 = vmatpush.bf16.msra.mxu0 %v1733
    %1824 = vmatpush.bf16.msra.mxu0 %v1727
    %1825 = vmatpush.bf16.msra.mxu0 %v1721
    %1826 = vmatpush.bf16.msra.mxu0 %v1715
    %1827 = vmatpush.bf16.msra.mxu0 %v1709
    %1828 = vmatmul.bf16.gmra.mxu0 %v1580
    %v1829 = vpop.f32.mrf.mxu0
    %v1830 = vadd.f32 %v1430, %v1829
    %v1831 = vpop.f32.mrf.mxu0
    %v1832 = vadd.f32 %v1432, %v1831
    %1833 = vdwg.mxu0
    %1834 = vmatpush.bf16.msra.mxu0 0
    %1835 = vmatpush.bf16.msra.mxu0 0
    %1836 = vmatpush.bf16.msra.mxu0 0
    %1837 = vmatpush.bf16.msra.mxu0 0
    %1838 = vmatpush.bf16.msra.mxu0 0
    %1839 = vmatpush.bf16.msra.mxu0 0
    %1840 = vmatpush.bf16.msra.mxu0 0
    %1841 = vmatpush.bf16.msra.mxu0 %v1757
    %1842 = vmatmul.bf16.gmra.mxu0 %v1818
    %v1843 = vpop.f32.mrf.mxu0
    %v1844 = vadd.f32 %v1830, %v1843
    %v1845 = vpop.f32.mrf.mxu0
    %v1846 = vadd.f32 %v1832, %v1845
    %1847 = vdwg.mxu0
    %1848 = vmatpush.bf16.msra.mxu0 %v1752
    %1849 = vmatpush.bf16.msra.mxu0 %v1746
    %1850 = vmatpush.bf16.msra.mxu0 %v1740
    %1851 = vmatpush.bf16.msra.mxu0 %v1734
    %1852 = vmatpush.bf16.msra.mxu0 %v1728
    %1853 = vmatpush.bf16.msra.mxu0 %v1722
    %1854 = vmatpush.bf16.msra.mxu0 %v1716
    %1855 = vmatpush.bf16.msra.mxu0 %v1710
    %1856 = vmatmul.bf16.gmra.mxu0 %v1580
    %v1857 = vpop.f32.mrf.mxu0
    %v1858 = vadd.f32 %v1458, %v1857
    %v1859 = vpop.f32.mrf.mxu0
    %v1860 = vadd.f32 %v1460, %v1859
    %1861 = vdwg.mxu0
    %1862 = vmatpush.bf16.msra.mxu0 0
    %1863 = vmatpush.bf16.msra.mxu0 0
    %1864 = vmatpush.bf16.msra.mxu0 0
    %1865 = vmatpush.bf16.msra.mxu0 0
    %1866 = vmatpush.bf16.msra.mxu0 0
    %1867 = vmatpush.bf16.msra.mxu0 0
    %1868 = vmatpush.bf16.msra.mxu0 0
    %1869 = vmatpush.bf16.msra.mxu0 %v1758
    %1870 = vmatmul.bf16.gmra.mxu0 %v1818
    %v1871 = vpop.f32.mrf.mxu0
    %v1872 = vadd.f32 %v1858, %v1871
    %v1873 = vpop.f32.mrf.mxu0
    %v1874 = vadd.f32 %v1860, %v1873
    %1875 = vdwg.mxu0
    %1876 = vmatpush.bf16.msra.mxu0 %v1753
    %1877 = vmatpush.bf16.msra.mxu0 %v1747
    %1878 = vmatpush.bf16.msra.mxu0 %v1741
    %1879 = vmatpush.bf16.msra.mxu0 %v1735
    %1880 = vmatpush.bf16.msra.mxu0 %v1729
    %1881 = vmatpush.bf16.msra.mxu0 %v1723
    %1882 = vmatpush.bf16.msra.mxu0 %v1717
    %1883 = vmatpush.bf16.msra.mxu0 %v1711
    %1884 = vmatmul.bf16.gmra.mxu0 %v1580
    %v1885 = vpop.f32.mrf.mxu0
    %v1886 = vadd.f32 %v1486, %v1885
    %v1887 = vpop.f32.mrf.mxu0
    %v1888 = vadd.f32 %v1488, %v1887
    %1889 = vdwg.mxu0
    %1890 = vmatpush.bf16.msra.mxu0 0
    %1891 = vmatpush.bf16.msra.mxu0 0
    %1892 = vmatpush.bf16.msra.mxu0 0
    %1893 = vmatpush.bf16.msra.mxu0 0
    %1894 = vmatpush.bf16.msra.mxu0 0
    %1895 = vmatpush.bf16.msra.mxu0 0
    %1896 = vmatpush.bf16.msra.mxu0 0
    %1897 = vmatpush.bf16.msra.mxu0 %v1759
    %1898 = vmatmul.bf16.gmra.mxu0 %v1818
    %v1899 = vpop.f32.mrf.mxu0
    %v1900 = vadd.f32 %v1886, %v1899
    %v1901 = vpop.f32.mrf.mxu0
    %v1902 = vadd.f32 %v1888, %v1901
    %1903 = vdwg.mxu0
    %1904 = vmatpush.bf16.msra.mxu0 %v1754
    %1905 = vmatpush.bf16.msra.mxu0 %v1748
    %1906 = vmatpush.bf16.msra.mxu0 %v1742
    %1907 = vmatpush.bf16.msra.mxu0 %v1736
    %1908 = vmatpush.bf16.msra.mxu0 %v1730
    %1909 = vmatpush.bf16.msra.mxu0 %v1724
    %1910 = vmatpush.bf16.msra.mxu0 %v1718
    %1911 = vmatpush.bf16.msra.mxu0 %v1712
    %1912 = vmatmul.bf16.gmra.mxu0 %v1580
    %v1913 = vpop.f32.mrf.mxu0
    %v1914 = vadd.f32 %v1514, %v1913
    %v1915 = vpop.f32.mrf.mxu0
    %v1916 = vadd.f32 %v1516, %v1915
    %1917 = vdwg.mxu0
    %1918 = vmatpush.bf16.msra.mxu0 0
    %1919 = vmatpush.bf16.msra.mxu0 0
    %1920 = vmatpush.bf16.msra.mxu0 0
    %1921 = vmatpush.bf16.msra.mxu0 0
    %1922 = vmatpush.bf16.msra.mxu0 0
    %1923 = vmatpush.bf16.msra.mxu0 0
    %1924 = vmatpush.bf16.msra.mxu0 0
    %1925 = vmatpush.bf16.msra.mxu0 %v1760
    %1926 = vmatmul.bf16.gmra.mxu0 %v1818
    %v1927 = vpop.f32.mrf.mxu0
    %v1928 = vadd.f32 %v1914, %v1927
    %v1929 = vpop.f32.mrf.mxu0
    %v1930 = vadd.f32 %v1916, %v1929
    %1931 = vdwg.mxu0
    %1932 = vmatpush.bf16.msra.mxu0 %v1755
    %1933 = vmatpush.bf16.msra.mxu0 %v1749
    %1934 = vmatpush.bf16.msra.mxu0 %v1743
    %1935 = vmatpush.bf16.msra.mxu0 %v1737
    %1936 = vmatpush.bf16.msra.mxu0 %v1731
    %1937 = vmatpush.bf16.msra.mxu0 %v1725
    %1938 = vmatpush.bf16.msra.mxu0 %v1719
    %1939 = vmatpush.bf16.msra.mxu0 %v1713
    %1940 = vmatmul.bf16.gmra.mxu0 %v1580
    %v1941 = vpop.f32.mrf.mxu0
    %v1942 = vadd.f32 %v1542, %v1941
    %v1943 = vpop.f32.mrf.mxu0
    %v1944 = vadd.f32 %v1544, %v1943
    %1945 = vdwg.mxu0
    %1946 = vmatpush.bf16.msra.mxu0 0
    %1947 = vmatpush.bf16.msra.mxu0 0
    %1948 = vmatpush.bf16.msra.mxu0 0
    %1949 = vmatpush.bf16.msra.mxu0 0
    %1950 = vmatpush.bf16.msra.mxu0 0
    %1951 = vmatpush.bf16.msra.mxu0 0
    %1952 = vmatpush.bf16.msra.mxu0 0
    %1953 = vmatpush.bf16.msra.mxu0 %v1761
    %1954 = vmatmul.bf16.gmra.mxu0 %v1818
    %v1955 = vpop.f32.mrf.mxu0
    %v1956 = vadd.f32 %v1942, %v1955
    %v1957 = vpop.f32.mrf.mxu0
    %v1958 = vadd.f32 %v1944, %v1957
    %1959 = vdwg.mxu0
    %1960 = vmatpush.bf16.msra.mxu0 %v1756
    %1961 = vmatpush.bf16.msra.mxu0 %v1750
    %1962 = vmatpush.bf16.msra.mxu0 %v1744
    %1963 = vmatpush.bf16.msra.mxu0 %v1738
    %1964 = vmatpush.bf16.msra.mxu0 %v1732
    %1965 = vmatpush.bf16.msra.mxu0 %v1726
    %1966 = vmatpush.bf16.msra.mxu0 %v1720
    %1967 = vmatpush.bf16.msra.mxu0 %v1714
    %1968 = vmatmul.bf16.gmra.mxu0 %v1580
    %v1969 = vpop.f32.mrf.mxu0
    %v1970 = vadd.f32 %v1570, %v1969
    %v1971 = vpop.f32.mrf.mxu0
    %v1972 = vadd.f32 %v1572, %v1971
    %1973 = vdwg.mxu0
    %1974 = vmatpush.bf16.msra.mxu0 0
    %1975 = vmatpush.bf16.msra.mxu0 0
    %1976 = vmatpush.bf16.msra.mxu0 0
    %1977 = vmatpush.bf16.msra.mxu0 0
    %1978 = vmatpush.bf16.msra.mxu0 0
    %1979 = vmatpush.bf16.msra.mxu0 0
    %1980 = vmatpush.bf16.msra.mxu0 0
    %1981 = vmatpush.bf16.msra.mxu0 %v1762
    %1982 = vmatmul.bf16.gmra.mxu0 %v1818
    %v1983 = vpop.f32.mrf.mxu0
    %v1984 = vadd.f32 %v1970, %v1983
    %v1985 = vpop.f32.mrf.mxu0
    %v1986 = vadd.f32 %v1972, %v1985
    %1987 = vdwg.mxu0
    %v1988 = vld [vmem:[%s7] sm:$0xff]
    %v1989 = vld [vmem:[%s7 + $0x8] sm:$0xff]
    %1991 = vset.pattern.permute.xlu0 0
    %1992 = vperm.xlu0 %1991, %v1988
    %v1993 = vpop.permute.xlu0 %1992
    %1996 = vset.pattern.permute.xlu0 0
    %1997 = vperm.xlu0 %1996, %v1989
    %v1998 = vpop.permute.xlu0 %1997
    %v2000 = vadd.f32 %v1844, %v1993
    %v2001 = vadd.f32 %v1872, %v1993
    %v2002 = vadd.f32 %v1900, %v1993
    %v2003 = vadd.f32 %v1928, %v1993
    %v2004 = vadd.f32 %v1956, %v1993
    %v2005 = vadd.f32 %v1984, %v1993
    %v2006 = vadd.f32 %v1846, %v1998
    %v2007 = vadd.f32 %v1874, %v1998
    %v2008 = vadd.f32 %v1902, %v1998
    %v2009 = vadd.f32 %v1930, %v1998
    %v2010 = vadd.f32 %v1958, %v1998
    %v2011 = vadd.f32 %v1986, %v1998
    %v2012 = vmax.f32 %v2000, 0.0
    %v2013 = vmax.f32 %v2001, 0.0
    %v2014 = vmax.f32 %v2002, 0.0
    %v2015 = vmax.f32 %v2003, 0.0
    %v2016 = vmax.f32 %v2004, 0.0
    %v2017 = vmax.f32 %v2005, 0.0
    %v2018 = vmax.f32 %v2006, 0.0
    %v2019 = vmax.f32 %v2007, 0.0
    %v2020 = vmax.f32 %v2008, 0.0
    %v2021 = vmax.f32 %v2009, 0.0
    %v2022 = vmax.f32 %v2010, 0.0
    %v2023 = vmax.f32 %v2011, 0.0
    %v2024 = vmul.f32 %v2012, %v755
    %v2025 = vmul.f32 %v2013, %v756
    %v2026 = vmul.f32 %v2014, %v757
    %v2027 = vmul.f32 %v2015, %v758
    %v2028 = vmul.f32 %v2016, %v759
    %v2029 = vmul.f32 %v2017, %v760
    %v2030 = vmul.f32 %v2018, %v755
    %v2031 = vmul.f32 %v2019, %v756
    %v2032 = vmul.f32 %v2020, %v757
    %v2033 = vmul.f32 %v2021, %v758
    %v2034 = vmul.f32 %v2022, %v759
    %v2035 = vmul.f32 %v2023, %v760
    %v2036 = vpack.c.bf16 %v2025, %v2024
    %v2037 = vpack.c.bf16 %v2027, %v2026
    %v2038 = vpack.c.bf16 %v2029, %v2028
    %v2039 = vpack.c.bf16 %v2031, %v2030
    %v2040 = vpack.c.bf16 %v2033, %v2032
    %v2041 = vpack.c.bf16 %v2035, %v2034
    %v2048 = vunpack.c.l.b16 %v2036
    %v2049 = vunpack.c.h.b16 %v2036
    %v2050 = vunpack.c.l.b16 %v2037
    %v2051 = vunpack.c.h.b16 %v2037
    %v2052 = vunpack.c.l.b16 %v2038
    %v2053 = vunpack.c.h.b16 %v2038
    %v2054 = vunpack.c.l.b16 %v2039
    %v2055 = vunpack.c.h.b16 %v2039
    %v2056 = vunpack.c.l.b16 %v2040
    %v2057 = vunpack.c.h.b16 %v2040
    %v2058 = vunpack.c.l.b16 %v2041
    %v2059 = vunpack.c.h.b16 %v2041
    %v2060 = vpack.c.b16 %v2054, %v2048
    %v2061 = vpack.c.b16 %v2055, %v2049
    %v2062 = vpack.c.b16 %v2056, %v2050
    %v2063 = vpack.c.b16 %v2057, %v2051
    %v2064 = vpack.c.b16 %v2058, %v2052
    %v2065 = vpack.c.b16 %v2059, %v2053
    %v2066 = vld [vmem:[#allocation8] sm:$0xff]
    %v2067 = vld [vmem:[#allocation8 + $0x8] sm:$0xff]
    %2068 = vrot.lane.b32.xlu0 %v2060, 127
    %v2069 = vpop.permute.xlu0 %2068
    %2070 = vrot.lane.b32.xlu0 %v2061, 127
    %v2071 = vpop.permute.xlu0 %2070
    %2072 = vrot.lane.b32.xlu0 %v2062, 127
    %v2073 = vpop.permute.xlu0 %2072
    %2074 = vrot.lane.b32.xlu0 %v2063, 127
    %v2075 = vpop.permute.xlu0 %2074
    %2076 = vrot.lane.b32.xlu0 %v2064, 127
    %v2077 = vpop.permute.xlu0 %2076
    %2078 = vrot.lane.b32.xlu0 %v2065, 127
    %v2079 = vpop.permute.xlu0 %2078
    %v2080 = vsel %vm160, %v1004, %v2069
    %v2081 = vsel %vm160, %v2069, %v2071
    %v2082 = vsel %vm160, %v2071, %v2073
    %v2083 = vsel %vm160, %v2073, %v2075
    %v2084 = vsel %vm160, %v2075, %v2077
    %v2085 = vsel %vm160, %v2077, %v2079
    %2086 = vrot.lane.b32.xlu0 %v2060, 126
    %v2087 = vpop.permute.xlu0 %2086
    %2088 = vrot.lane.b32.xlu0 %v2061, 126
    %v2089 = vpop.permute.xlu0 %2088
    %2090 = vrot.lane.b32.xlu0 %v2062, 126
    %v2091 = vpop.permute.xlu0 %2090
    %2092 = vrot.lane.b32.xlu0 %v2063, 126
    %v2093 = vpop.permute.xlu0 %2092
    %2094 = vrot.lane.b32.xlu0 %v2064, 126
    %v2095 = vpop.permute.xlu0 %2094
    %2096 = vrot.lane.b32.xlu0 %v2065, 126
    %v2097 = vpop.permute.xlu0 %2096
    %v2098 = vsel %vm181, %v1024, %v2087
    %v2099 = vsel %vm181, %v2087, %v2089
    %v2100 = vsel %vm181, %v2089, %v2091
    %v2101 = vsel %vm181, %v2091, %v2093
    %v2102 = vsel %vm181, %v2093, %v2095
    %v2103 = vsel %vm181, %v2095, %v2097
    %2104 = vrot.lane.b32.xlu0 %v2060, 110
    %v2105 = vpop.permute.xlu0 %2104
    %2106 = vrot.lane.b32.xlu0 %v2061, 110
    %v2107 = vpop.permute.xlu0 %2106
    %2108 = vrot.lane.b32.xlu0 %v2062, 110
    %v2109 = vpop.permute.xlu0 %2108
    %2110 = vrot.lane.b32.xlu0 %v2063, 110
    %v2111 = vpop.permute.xlu0 %2110
    %2112 = vrot.lane.b32.xlu0 %v2064, 110
    %v2113 = vpop.permute.xlu0 %2112
    %2114 = vrot.lane.b32.xlu0 %v2065, 110
    %v2115 = vpop.permute.xlu0 %2114
    %v2116 = vsel %vm202, %v1044, %v2105
    %v2117 = vsel %vm202, %v2105, %v2107
    %v2118 = vsel %vm202, %v2107, %v2109
    %v2119 = vsel %vm202, %v2109, %v2111
    %v2120 = vsel %vm202, %v2111, %v2113
    %v2121 = vsel %vm202, %v2113, %v2115
    %2122 = vrot.lane.b32.xlu0 %v2060, 109
    %v2123 = vpop.permute.xlu0 %2122
    %2124 = vrot.lane.b32.xlu0 %v2061, 109
    %v2125 = vpop.permute.xlu0 %2124
    %2126 = vrot.lane.b32.xlu0 %v2062, 109
    %v2127 = vpop.permute.xlu0 %2126
    %2128 = vrot.lane.b32.xlu0 %v2063, 109
    %v2129 = vpop.permute.xlu0 %2128
    %2130 = vrot.lane.b32.xlu0 %v2064, 109
    %v2131 = vpop.permute.xlu0 %2130
    %2132 = vrot.lane.b32.xlu0 %v2065, 109
    %v2133 = vpop.permute.xlu0 %2132
    %v2134 = vsel %vm221, %v2123, %v2125
    %v2135 = vsel %vm221, %v2125, %v2127
    %v2136 = vsel %vm221, %v2127, %v2129
    %v2137 = vsel %vm221, %v2129, %v2131
    %v2138 = vsel %vm221, %v2131, %v2133
    %2139 = vrot.lane.b32.xlu0 %v2060, 108
    %v2140 = vpop.permute.xlu0 %2139
    %2141 = vrot.lane.b32.xlu0 %v2061, 108
    %v2142 = vpop.permute.xlu0 %2141
    %2143 = vrot.lane.b32.xlu0 %v2062, 108
    %v2144 = vpop.permute.xlu0 %2143
    %2145 = vrot.lane.b32.xlu0 %v2063, 108
    %v2146 = vpop.permute.xlu0 %2145
    %2147 = vrot.lane.b32.xlu0 %v2064, 108
    %v2148 = vpop.permute.xlu0 %2147
    %2149 = vrot.lane.b32.xlu0 %v2065, 108
    %v2150 = vpop.permute.xlu0 %2149
    %v2151 = vsel %vm244, %v2140, %v2142
    %v2152 = vsel %vm244, %v2142, %v2144
    %v2153 = vsel %vm244, %v2144, %v2146
    %v2154 = vsel %vm244, %v2146, %v2148
    %v2155 = vsel %vm244, %v2148, %v2150
    %v2156 = vsel %vm244, %v2150, %v1093
    %2157 = vrot.lane.b32.xlu0 %v2060, 92
    %v2158 = vpop.permute.xlu0 %2157
    %2159 = vrot.lane.b32.xlu0 %v2061, 92
    %v2160 = vpop.permute.xlu0 %2159
    %2161 = vrot.lane.b32.xlu0 %v2062, 92
    %v2162 = vpop.permute.xlu0 %2161
    %2163 = vrot.lane.b32.xlu0 %v2063, 92
    %v2164 = vpop.permute.xlu0 %2163
    %2165 = vrot.lane.b32.xlu0 %v2064, 92
    %v2166 = vpop.permute.xlu0 %2165
    %2167 = vrot.lane.b32.xlu0 %v2065, 92
    %v2168 = vpop.permute.xlu0 %2167
    %v2169 = vsel %vm265, %v2158, %v2160
    %v2170 = vsel %vm265, %v2160, %v2162
    %v2171 = vsel %vm265, %v2162, %v2164
    %v2172 = vsel %vm265, %v2164, %v2166
    %v2173 = vsel %vm265, %v2166, %v2168
    %v2174 = vsel %vm265, %v2168, %v1113
    %2175 = vrot.lane.b32.xlu0 %v2060, 91
    %v2176 = vpop.permute.xlu0 %2175
    %2177 = vrot.lane.b32.xlu0 %v2061, 91
    %v2178 = vpop.permute.xlu0 %2177
    %2179 = vrot.lane.b32.xlu0 %v2062, 91
    %v2180 = vpop.permute.xlu0 %2179
    %2181 = vrot.lane.b32.xlu0 %v2063, 91
    %v2182 = vpop.permute.xlu0 %2181
    %2183 = vrot.lane.b32.xlu0 %v2064, 91
    %v2184 = vpop.permute.xlu0 %2183
    %2185 = vrot.lane.b32.xlu0 %v2065, 91
    %v2186 = vpop.permute.xlu0 %2185
    %v2187 = vsel %vm286, %v2176, %v2178
    %v2188 = vsel %vm286, %v2178, %v2180
    %v2189 = vsel %vm286, %v2180, %v2182
    %v2190 = vsel %vm286, %v2182, %v2184
    %v2191 = vsel %vm286, %v2184, %v2186
    %v2192 = vsel %vm286, %v2186, %v1133
    %2193 = vrot.lane.b32.xlu0 %v2060, 90
    %v2194 = vpop.permute.xlu0 %2193
    %2195 = vrot.lane.b32.xlu0 %v2061, 90
    %v2196 = vpop.permute.xlu0 %2195
    %2197 = vrot.lane.b32.xlu0 %v2062, 90
    %v2198 = vpop.permute.xlu0 %2197
    %2199 = vrot.lane.b32.xlu0 %v2063, 90
    %v2200 = vpop.permute.xlu0 %2199
    %2201 = vrot.lane.b32.xlu0 %v2064, 90
    %v2202 = vpop.permute.xlu0 %2201
    %2203 = vrot.lane.b32.xlu0 %v2065, 90
    %v2204 = vpop.permute.xlu0 %2203
    %v2205 = vsel %vm307, %v2194, %v2196
    %v2206 = vsel %vm307, %v2196, %v2198
    %v2207 = vsel %vm307, %v2198, %v2200
    %v2208 = vsel %vm307, %v2200, %v2202
    %v2209 = vsel %vm307, %v2202, %v2204
    %v2210 = vsel %vm307, %v2204, %v1153
    %v2211 = vld [vmem:[%s9] sm:$0xff]
    %v2212 = vld [vmem:[%s9 + $0x8] sm:$0xff]
    %2214 = vset.pattern.permute.xlu0 0
    %2215 = vperm.xlu0 %2214, %v2211
    %v2216 = vpop.permute.xlu0 %2215
    %2219 = vset.pattern.permute.xlu0 0
    %2220 = vperm.xlu0 %2219, %v2212
    %v2221 = vpop.permute.xlu0 %2220
    %v2225 = vunpack.c.l.b16 %v2066
    %v2226 = vunpack.c.h.b16 %v2066
    %v2227 = vunpack.c.l.b16 %v2067
    %v2228 = vunpack.c.h.b16 %v2067
    %v2229 = vpack.c.b16 %v2227, %v2225
    %v2230 = vpack.c.b16 %v2228, %v2226
    %2232 = vrot.lane.b32.xlu0 %v2060, 19
    %v2233 = vpop.permute.xlu0 %2232
    %2234 = vrot.lane.b32.xlu0 %v2061, 19
    %v2235 = vpop.permute.xlu0 %2234
    %2236 = vrot.lane.b32.xlu0 %v2062, 19
    %v2237 = vpop.permute.xlu0 %2236
    %2238 = vrot.lane.b32.xlu0 %v2063, 19
    %v2239 = vpop.permute.xlu0 %2238
    %2240 = vrot.lane.b32.xlu0 %v2064, 19
    %v2241 = vpop.permute.xlu0 %2240
    %2242 = vrot.lane.b32.xlu0 %v2065, 19
    %v2243 = vpop.permute.xlu0 %2242
    %2244 = vrot.lane.b32.xlu0 %v2080, 19
    %v2245 = vpop.permute.xlu0 %2244
    %2246 = vrot.lane.b32.xlu0 %v2081, 19
    %v2247 = vpop.permute.xlu0 %2246
    %2248 = vrot.lane.b32.xlu0 %v2082, 19
    %v2249 = vpop.permute.xlu0 %2248
    %2250 = vrot.lane.b32.xlu0 %v2083, 19
    %v2251 = vpop.permute.xlu0 %2250
    %2252 = vrot.lane.b32.xlu0 %v2084, 19
    %v2253 = vpop.permute.xlu0 %2252
    %2254 = vrot.lane.b32.xlu0 %v2085, 19
    %v2255 = vpop.permute.xlu0 %2254
    %2256 = vrot.lane.b32.xlu0 %v2079, 19
    %v2257 = vpop.permute.xlu0 %2256
    %2258 = vrot.lane.b32.xlu0 %v2098, 19
    %v2259 = vpop.permute.xlu0 %2258
    %2260 = vrot.lane.b32.xlu0 %v2099, 19
    %v2261 = vpop.permute.xlu0 %2260
    %2262 = vrot.lane.b32.xlu0 %v2100, 19
    %v2263 = vpop.permute.xlu0 %2262
    %2264 = vrot.lane.b32.xlu0 %v2101, 19
    %v2265 = vpop.permute.xlu0 %2264
    %2266 = vrot.lane.b32.xlu0 %v2102, 19
    %v2267 = vpop.permute.xlu0 %2266
    %2268 = vrot.lane.b32.xlu0 %v2103, 19
    %v2269 = vpop.permute.xlu0 %2268
    %2270 = vrot.lane.b32.xlu0 %v2097, 19
    %v2271 = vpop.permute.xlu0 %2270
    %2272 = vrot.lane.b32.xlu0 %v2116, 19
    %v2273 = vpop.permute.xlu0 %2272
    %2274 = vrot.lane.b32.xlu0 %v2117, 19
    %v2275 = vpop.permute.xlu0 %2274
    %2276 = vrot.lane.b32.xlu0 %v2118, 19
    %v2277 = vpop.permute.xlu0 %2276
    %2278 = vrot.lane.b32.xlu0 %v2119, 19
    %v2279 = vpop.permute.xlu0 %2278
    %2280 = vrot.lane.b32.xlu0 %v2120, 19
    %v2281 = vpop.permute.xlu0 %2280
    %2282 = vrot.lane.b32.xlu0 %v2121, 19
    %v2283 = vpop.permute.xlu0 %2282
    %2284 = vrot.lane.b32.xlu0 %v2115, 19
    %v2285 = vpop.permute.xlu0 %2284
    %2286 = vrot.lane.b32.xlu0 %v2123, 19
    %v2287 = vpop.permute.xlu0 %2286
    %2288 = vrot.lane.b32.xlu0 %v2134, 19
    %v2289 = vpop.permute.xlu0 %2288
    %2290 = vrot.lane.b32.xlu0 %v2135, 19
    %v2291 = vpop.permute.xlu0 %2290
    %2292 = vrot.lane.b32.xlu0 %v2136, 19
    %v2293 = vpop.permute.xlu0 %2292
    %2294 = vrot.lane.b32.xlu0 %v2137, 19
    %v2295 = vpop.permute.xlu0 %2294
    %2296 = vrot.lane.b32.xlu0 %v2138, 19
    %v2297 = vpop.permute.xlu0 %2296
    %2298 = vrot.lane.b32.xlu0 %v2133, 19
    %v2299 = vpop.permute.xlu0 %2298
    %2300 = vrot.lane.b32.xlu0 %v2140, 19
    %v2301 = vpop.permute.xlu0 %2300
    %2302 = vrot.lane.b32.xlu0 %v2151, 19
    %v2303 = vpop.permute.xlu0 %2302
    %2304 = vrot.lane.b32.xlu0 %v2152, 19
    %v2305 = vpop.permute.xlu0 %2304
    %2306 = vrot.lane.b32.xlu0 %v2153, 19
    %v2307 = vpop.permute.xlu0 %2306
    %2308 = vrot.lane.b32.xlu0 %v2154, 19
    %v2309 = vpop.permute.xlu0 %2308
    %2310 = vrot.lane.b32.xlu0 %v2155, 19
    %v2311 = vpop.permute.xlu0 %2310
    %2312 = vrot.lane.b32.xlu0 %v2156, 19
    %v2313 = vpop.permute.xlu0 %2312
    %2314 = vrot.lane.b32.xlu0 %v2158, 19
    %v2315 = vpop.permute.xlu0 %2314
    %2316 = vrot.lane.b32.xlu0 %v2169, 19
    %v2317 = vpop.permute.xlu0 %2316
    %2318 = vrot.lane.b32.xlu0 %v2170, 19
    %v2319 = vpop.permute.xlu0 %2318
    %2320 = vrot.lane.b32.xlu0 %v2171, 19
    %v2321 = vpop.permute.xlu0 %2320
    %2322 = vrot.lane.b32.xlu0 %v2172, 19
    %v2323 = vpop.permute.xlu0 %2322
    %2324 = vrot.lane.b32.xlu0 %v2173, 19
    %v2325 = vpop.permute.xlu0 %2324
    %2326 = vrot.lane.b32.xlu0 %v2174, 19
    %v2327 = vpop.permute.xlu0 %2326
    %2328 = vrot.lane.b32.xlu0 %v2176, 19
    %v2329 = vpop.permute.xlu0 %2328
    %2330 = vrot.lane.b32.xlu0 %v2187, 19
    %v2331 = vpop.permute.xlu0 %2330
    %2332 = vrot.lane.b32.xlu0 %v2188, 19
    %v2333 = vpop.permute.xlu0 %2332
    %2334 = vrot.lane.b32.xlu0 %v2189, 19
    %v2335 = vpop.permute.xlu0 %2334
    %2336 = vrot.lane.b32.xlu0 %v2190, 19
    %v2337 = vpop.permute.xlu0 %2336
    %2338 = vrot.lane.b32.xlu0 %v2191, 19
    %v2339 = vpop.permute.xlu0 %2338
    %2340 = vrot.lane.b32.xlu0 %v2192, 19
    %v2341 = vpop.permute.xlu0 %2340
    %2342 = vrot.lane.b32.xlu0 %v2194, 19
    %v2343 = vpop.permute.xlu0 %2342
    %2344 = vrot.lane.b32.xlu0 %v2205, 19
    %v2345 = vpop.permute.xlu0 %2344
    %2346 = vrot.lane.b32.xlu0 %v2206, 19
    %v2347 = vpop.permute.xlu0 %2346
    %2348 = vrot.lane.b32.xlu0 %v2207, 19
    %v2349 = vpop.permute.xlu0 %2348
    %2350 = vrot.lane.b32.xlu0 %v2208, 19
    %v2351 = vpop.permute.xlu0 %2350
    %2352 = vrot.lane.b32.xlu0 %v2209, 19
    %v2353 = vpop.permute.xlu0 %2352
    %2354 = vrot.lane.b32.xlu0 %v2210, 19
    %v2355 = vpop.permute.xlu0 %2354
    %v2356 = vsel %vm461, %v1170, %v2233
    %v2357 = vsel %vm461, %v2233, %v2235
    %v2358 = vsel %vm461, %v2235, %v2237
    %v2359 = vsel %vm461, %v2237, %v2239
    %v2360 = vsel %vm461, %v2239, %v2241
    %v2361 = vsel %vm461, %v2241, %v2243
    %v2362 = vsel %vm461, %v2245, %v2247
    %v2363 = vsel %vm461, %v2247, %v2249
    %v2364 = vsel %vm461, %v2249, %v2251
    %v2365 = vsel %vm461, %v2251, %v2253
    %v2366 = vsel %vm461, %v2253, %v2255
    %v2367 = vsel %vm461, %v2255, %v2257
    %v2368 = vsel %vm461, %v2259, %v2261
    %v2369 = vsel %vm461, %v2261, %v2263
    %v2370 = vsel %vm461, %v2263, %v2265
    %v2371 = vsel %vm461, %v2265, %v2267
    %v2372 = vsel %vm461, %v2267, %v2269
    %v2373 = vsel %vm461, %v2269, %v2271
    %v2374 = vsel %vm461, %v2273, %v2275
    %v2375 = vsel %vm461, %v2275, %v2277
    %v2376 = vsel %vm461, %v2277, %v2279
    %v2377 = vsel %vm461, %v2279, %v2281
    %v2378 = vsel %vm461, %v2281, %v2283
    %v2379 = vsel %vm461, %v2283, %v2285
    %v2380 = vsel %vm461, %v2287, %v2289
    %v2381 = vsel %vm461, %v2289, %v2291
    %v2382 = vsel %vm461, %v2291, %v2293
    %v2383 = vsel %vm461, %v2293, %v2295
    %v2384 = vsel %vm461, %v2295, %v2297
    %v2385 = vsel %vm461, %v2297, %v2299
    %v2386 = vsel %vm461, %v2301, %v2303
    %v2387 = vsel %vm461, %v2303, %v2305
    %v2388 = vsel %vm461, %v2305, %v2307
    %v2389 = vsel %vm461, %v2307, %v2309
    %v2390 = vsel %vm461, %v2309, %v2311
    %v2391 = vsel %vm461, %v2311, %v2313
    %v2392 = vsel %vm461, %v2315, %v2317
    %v2393 = vsel %vm461, %v2317, %v2319
    %v2394 = vsel %vm461, %v2319, %v2321
    %v2395 = vsel %vm461, %v2321, %v2323
    %v2396 = vsel %vm461, %v2323, %v2325
    %v2397 = vsel %vm461, %v2325, %v2327
    %v2398 = vsel %vm461, %v2329, %v2331
    %v2399 = vsel %vm461, %v2331, %v2333
    %v2400 = vsel %vm461, %v2333, %v2335
    %v2401 = vsel %vm461, %v2335, %v2337
    %v2402 = vsel %vm461, %v2337, %v2339
    %v2403 = vsel %vm461, %v2339, %v2341
    %v2404 = vsel %vm461, %v2343, %v2345
    %v2405 = vsel %vm461, %v2345, %v2347
    %v2406 = vsel %vm461, %v2347, %v2349
    %v2407 = vsel %vm461, %v2349, %v2351
    %v2408 = vsel %vm461, %v2351, %v2353
    %v2409 = vsel %vm461, %v2353, %v2355
    %v2465 = vsel %vm570, %v2230, 0
    %2467 = vmatpush.bf16.msra.mxu0 %v2398
    %2468 = vmatpush.bf16.msra.mxu0 %v2392
    %2469 = vmatpush.bf16.msra.mxu0 %v2386
    %2470 = vmatpush.bf16.msra.mxu0 %v2380
    %2471 = vmatpush.bf16.msra.mxu0 %v2374
    %2472 = vmatpush.bf16.msra.mxu0 %v2368
    %2473 = vmatpush.bf16.msra.mxu0 %v2362
    %2474 = vmatpush.bf16.msra.mxu0 %v2356
    %2475 = vmatmul.bf16.gmra.mxu0 %v2229
    %v2476 = vpop.f32.mrf.mxu0
    %v2477 = vadd.f32 %v2216, %v2476
    %v2478 = vpop.f32.mrf.mxu0
    %v2479 = vadd.f32 %v2221, %v2478
    %2480 = vdwg.mxu0
    %2481 = vmatpush.bf16.msra.mxu0 0
    %2482 = vmatpush.bf16.msra.mxu0 0
    %2483 = vmatpush.bf16.msra.mxu0 0
    %2484 = vmatpush.bf16.msra.mxu0 0
    %2485 = vmatpush.bf16.msra.mxu0 0
    %2486 = vmatpush.bf16.msra.mxu0 0
    %2487 = vmatpush.bf16.msra.mxu0 0
    %2488 = vmatpush.bf16.msra.mxu0 %v2404
    %2489 = vmatmul.bf16.gmra.mxu0 %v2465
    %v2490 = vpop.f32.mrf.mxu0
    %v2491 = vadd.f32 %v2477, %v2490
    %v2492 = vpop.f32.mrf.mxu0
    %v2493 = vadd.f32 %v2479, %v2492
    %2494 = vdwg.mxu0
    %2495 = vmatpush.bf16.msra.mxu0 %v2399
    %2496 = vmatpush.bf16.msra.mxu0 %v2393
    %2497 = vmatpush.bf16.msra.mxu0 %v2387
    %2498 = vmatpush.bf16.msra.mxu0 %v2381
    %2499 = vmatpush.bf16.msra.mxu0 %v2375
    %2500 = vmatpush.bf16.msra.mxu0 %v2369
    %2501 = vmatpush.bf16.msra.mxu0 %v2363
    %2502 = vmatpush.bf16.msra.mxu0 %v2357
    %2503 = vmatmul.bf16.gmra.mxu0 %v2229
    %v2504 = vpop.f32.mrf.mxu0
    %v2505 = vadd.f32 %v2216, %v2504
    %v2506 = vpop.f32.mrf.mxu0
    %v2507 = vadd.f32 %v2221, %v2506
    %2508 = vdwg.mxu0
    %2509 = vmatpush.bf16.msra.mxu0 0
    %2510 = vmatpush.bf16.msra.mxu0 0
    %2511 = vmatpush.bf16.msra.mxu0 0
    %2512 = vmatpush.bf16.msra.mxu0 0
    %2513 = vmatpush.bf16.msra.mxu0 0
    %2514 = vmatpush.bf16.msra.mxu0 0
    %2515 = vmatpush.bf16.msra.mxu0 0
    %2516 = vmatpush.bf16.msra.mxu0 %v2405
    %2517 = vmatmul.bf16.gmra.mxu0 %v2465
    %v2518 = vpop.f32.mrf.mxu0
    %v2519 = vadd.f32 %v2505, %v2518
    %v2520 = vpop.f32.mrf.mxu0
    %v2521 = vadd.f32 %v2507, %v2520
    %2522 = vdwg.mxu0
    %2523 = vmatpush.bf16.msra.mxu0 %v2400
    %2524 = vmatpush.bf16.msra.mxu0 %v2394
    %2525 = vmatpush.bf16.msra.mxu0 %v2388
    %2526 = vmatpush.bf16.msra.mxu0 %v2382
    %2527 = vmatpush.bf16.msra.mxu0 %v2376
    %2528 = vmatpush.bf16.msra.mxu0 %v2370
    %2529 = vmatpush.bf16.msra.mxu0 %v2364
    %2530 = vmatpush.bf16.msra.mxu0 %v2358
    %2531 = vmatmul.bf16.gmra.mxu0 %v2229
    %v2532 = vpop.f32.mrf.mxu0
    %v2533 = vadd.f32 %v2216, %v2532
    %v2534 = vpop.f32.mrf.mxu0
    %v2535 = vadd.f32 %v2221, %v2534
    %2536 = vdwg.mxu0
    %2537 = vmatpush.bf16.msra.mxu0 0
    %2538 = vmatpush.bf16.msra.mxu0 0
    %2539 = vmatpush.bf16.msra.mxu0 0
    %2540 = vmatpush.bf16.msra.mxu0 0
    %2541 = vmatpush.bf16.msra.mxu0 0
    %2542 = vmatpush.bf16.msra.mxu0 0
    %2543 = vmatpush.bf16.msra.mxu0 0
    %2544 = vmatpush.bf16.msra.mxu0 %v2406
    %2545 = vmatmul.bf16.gmra.mxu0 %v2465
    %v2546 = vpop.f32.mrf.mxu0
    %v2547 = vadd.f32 %v2533, %v2546
    %v2548 = vpop.f32.mrf.mxu0
    %v2549 = vadd.f32 %v2535, %v2548
    %2550 = vdwg.mxu0
    %2551 = vmatpush.bf16.msra.mxu0 %v2401
    %2552 = vmatpush.bf16.msra.mxu0 %v2395
    %2553 = vmatpush.bf16.msra.mxu0 %v2389
    %2554 = vmatpush.bf16.msra.mxu0 %v2383
    %2555 = vmatpush.bf16.msra.mxu0 %v2377
    %2556 = vmatpush.bf16.msra.mxu0 %v2371
    %2557 = vmatpush.bf16.msra.mxu0 %v2365
    %2558 = vmatpush.bf16.msra.mxu0 %v2359
    %2559 = vmatmul.bf16.gmra.mxu0 %v2229
    %v2560 = vpop.f32.mrf.mxu0
    %v2561 = vadd.f32 %v2216, %v2560
    %v2562 = vpop.f32.mrf.mxu0
    %v2563 = vadd.f32 %v2221, %v2562
    %2564 = vdwg.mxu0
    %2565 = vmatpush.bf16.msra.mxu0 0
    %2566 = vmatpush.bf16.msra.mxu0 0
    %2567 = vmatpush.bf16.msra.mxu0 0
    %2568 = vmatpush.bf16.msra.mxu0 0
    %2569 = vmatpush.bf16.msra.mxu0 0
    %2570 = vmatpush.bf16.msra.mxu0 0
    %2571 = vmatpush.bf16.msra.mxu0 0
    %2572 = vmatpush.bf16.msra.mxu0 %v2407
    %2573 = vmatmul.bf16.gmra.mxu0 %v2465
    %v2574 = vpop.f32.mrf.mxu0
    %v2575 = vadd.f32 %v2561, %v2574
    %v2576 = vpop.f32.mrf.mxu0
    %v2577 = vadd.f32 %v2563, %v2576
    %2578 = vdwg.mxu0
    %2579 = vmatpush.bf16.msra.mxu0 %v2402
    %2580 = vmatpush.bf16.msra.mxu0 %v2396
    %2581 = vmatpush.bf16.msra.mxu0 %v2390
    %2582 = vmatpush.bf16.msra.mxu0 %v2384
    %2583 = vmatpush.bf16.msra.mxu0 %v2378
    %2584 = vmatpush.bf16.msra.mxu0 %v2372
    %2585 = vmatpush.bf16.msra.mxu0 %v2366
    %2586 = vmatpush.bf16.msra.mxu0 %v2360
    %2587 = vmatmul.bf16.gmra.mxu0 %v2229
    %v2588 = vpop.f32.mrf.mxu0
    %v2589 = vadd.f32 %v2216, %v2588
    %v2590 = vpop.f32.mrf.mxu0
    %v2591 = vadd.f32 %v2221, %v2590
    %2592 = vdwg.mxu0
    %2593 = vmatpush.bf16.msra.mxu0 0
    %2594 = vmatpush.bf16.msra.mxu0 0
    %2595 = vmatpush.bf16.msra.mxu0 0
    %2596 = vmatpush.bf16.msra.mxu0 0
    %2597 = vmatpush.bf16.msra.mxu0 0
    %2598 = vmatpush.bf16.msra.mxu0 0
    %2599 = vmatpush.bf16.msra.mxu0 0
    %2600 = vmatpush.bf16.msra.mxu0 %v2408
    %2601 = vmatmul.bf16.gmra.mxu0 %v2465
    %v2602 = vpop.f32.mrf.mxu0
    %v2603 = vadd.f32 %v2589, %v2602
    %v2604 = vpop.f32.mrf.mxu0
    %v2605 = vadd.f32 %v2591, %v2604
    %2606 = vdwg.mxu0
    %2607 = vmatpush.bf16.msra.mxu0 %v2403
    %2608 = vmatpush.bf16.msra.mxu0 %v2397
    %2609 = vmatpush.bf16.msra.mxu0 %v2391
    %2610 = vmatpush.bf16.msra.mxu0 %v2385
    %2611 = vmatpush.bf16.msra.mxu0 %v2379
    %2612 = vmatpush.bf16.msra.mxu0 %v2373
    %2613 = vmatpush.bf16.msra.mxu0 %v2367
    %2614 = vmatpush.bf16.msra.mxu0 %v2361
    %2615 = vmatmul.bf16.gmra.mxu0 %v2229
    %v2616 = vpop.f32.mrf.mxu0
    %v2617 = vadd.f32 %v2216, %v2616
    %v2618 = vpop.f32.mrf.mxu0
    %v2619 = vadd.f32 %v2221, %v2618
    %2620 = vdwg.mxu0
    %2621 = vmatpush.bf16.msra.mxu0 0
    %2622 = vmatpush.bf16.msra.mxu0 0
    %2623 = vmatpush.bf16.msra.mxu0 0
    %2624 = vmatpush.bf16.msra.mxu0 0
    %2625 = vmatpush.bf16.msra.mxu0 0
    %2626 = vmatpush.bf16.msra.mxu0 0
    %2627 = vmatpush.bf16.msra.mxu0 0
    %2628 = vmatpush.bf16.msra.mxu0 %v2409
    %2629 = vmatmul.bf16.gmra.mxu0 %v2465
    %v2630 = vpop.f32.mrf.mxu0
    %v2631 = vadd.f32 %v2617, %v2630
    %v2632 = vpop.f32.mrf.mxu0
    %v2633 = vadd.f32 %v2619, %v2632
    %2634 = vdwg.mxu0
    %v2635 = vmax.f32 %v2491, 0.0
    %v2636 = vmax.f32 %v2519, 0.0
    %v2637 = vmax.f32 %v2547, 0.0
    %v2638 = vmax.f32 %v2575, 0.0
    %v2639 = vmax.f32 %v2603, 0.0
    %v2640 = vmax.f32 %v2631, 0.0
    %v2641 = vmax.f32 %v2493, 0.0
    %v2642 = vmax.f32 %v2521, 0.0
    %v2643 = vmax.f32 %v2549, 0.0
    %v2644 = vmax.f32 %v2577, 0.0
    %v2645 = vmax.f32 %v2605, 0.0
    %v2646 = vmax.f32 %v2633, 0.0
    %2647 = vst [vmem:[#allocation10] sm:$0xff] %v2635
    %2648 = vst [vmem:[#allocation10 + $0x8] sm:$0xff] %v2636
    %2649 = vst [vmem:[#allocation10 + $0x10] sm:$0xff] %v2637
    %2650 = vst [vmem:[#allocation10 + $0x18] sm:$0xff] %v2638
    %2651 = vst [vmem:[#allocation10 + $0x20] sm:$0xff] %v2639
    %2652 = vst [vmem:[#allocation10 + $0x28] sm:$0xff] %v2640
    %2653 = vst [vmem:[#allocation10 + $0x30] sm:$0xff] %v2641
    %2654 = vst [vmem:[#allocation10 + $0x38] sm:$0xff] %v2642
    %2655 = vst [vmem:[#allocation10 + $0x40] sm:$0xff] %v2643
    %2656 = vst [vmem:[#allocation10 + $0x48] sm:$0xff] %v2644
    %2657 = vst [vmem:[#allocation10 + $0x50] sm:$0xff] %v2645
    %2658 = vst [vmem:[#allocation10 + $0x58] sm:$0xff] %v2646
    // Predicated region
    $region58: #{tpu_custom_call.1} parent=1 // pred_check
      _
    $region59: #{tpu_custom_call.1} parent=1 // pred_check_branch
      %2660 = sbr.rel (0) target = $region61
    $region60: #{tpu_custom_call.1} parent=1 // pred_region
      %2662 = vsyncadd [#allocation4], 0
      %s2663 = sshll.u32 [#allocation10], 4
      %s2664 = int_to_ptr.vmem [resolvable:$true] %s2663
      %s2665 = sshll.u32 %s10, 4
      %s2666 = int_to_ptr.hbm [resolvable:$true] %s2665
      %2671 = dma.vmem_to_hbm [thread:$0]  %s2664, 1536, %s2666, [#allocation4], 768, 768, 48
    $region61: #{tpu_custom_call.1} parent=1 // pred_fallthru
      _
    // Predicated region
    $region62: #{tpu_custom_call.1} parent=1 // pred_check
      _
    $region63: #{tpu_custom_call.1} parent=1 // pred_check_branch
      %2673 = sbr.rel (0) target = $region65
    $region64: #{tpu_custom_call.1} parent=1 // pred_region
      %2675 = dma.done [#allocation4], 1536
    $region65: #{tpu_custom_call.1} parent=1 // pred_fallthru
      _
    %2676 = vsyncpa [#allocation3], 1
    %2677 = vsyncpa [#allocation6], 1
    %2678 = vsyncpa [#allocation9], 1
    %2679 = vsyncpa [#allocation4], 1

</llo_original>
